<compile_context>
chip_gen: v6e
topology: v6e:2x2x1
jax: 0.10.0
libtpu: 0.0.40
codegen_flags: <defaults>
</compile_context>

<pallas_src>
import jax
import jax.numpy as jnp
from jax.experimental import pallas as pl
from jax.experimental.pallas import tpu as pltpu


def _round_up(x, m):
    return (x + m - 1) // m * m


# ----------------------------------------------------------------------------
# Pallas kernel: one grid step == one LSTM layer, full sequence in-kernel.
# ----------------------------------------------------------------------------
def encoder_lstm_kernel(emb_ref, w_ih_ref, w_hh_ref, b_ref,
                        h_out_ref, c_out_ref,
                        seq_sc, pre_sc, dma_sem):
    layer = pl.program_id(0)
    SB, D = seq_sc.shape          # (S*B, D)  inter-layer activation buffer
    _, B, H = h_out_ref.shape     # (1, B, H)
    S = SB // B

    # Layer 0: single HBM -> VMEM DMA of the embedded sequence into the
    # resident activation buffer (replaces the old staging copy + pipelined
    # full-size input block).
    @pl.when(layer == 0)
    def _():
        cp = pltpu.make_async_copy(emb_ref, seq_sc, dma_sem)
        cp.start()
        cp.wait()

    # Hoisted input projection for ALL timesteps (off the serial critical
    # path): one (S*B, D) @ (D, G) matmul, bias folded in.  Zero-padded rows
    # of W_ih kill any stale columns of seq_sc when D > H.
    pre_sc[...] = (
        jnp.dot(seq_sc[...], w_ih_ref[0], preferred_element_type=jnp.float32)
        + b_ref[0])

    w_hh = w_hh_ref[0]            # (H, G), hoisted out of the time loop

    # PyTorch nn.LSTM default initial state is zeros for every layer.
    h0 = jnp.zeros((B, H), jnp.float32)
    c0 = jnp.zeros((B, H), jnp.float32)

    def step(t, carry):
        h_prev, c_prev = carry
        r = pl.multiple_of(t * B, B)
        # Serial path: only the small recurrence matmul (M=B, K=H, N=G).
        gates = pre_sc[pl.ds(r, B), :] + jnp.dot(
            h_prev, w_hh, preferred_element_type=jnp.float32)
        # PyTorch gate order i, f, g, o — dense, stride H within the G lanes.
        i_g = jax.nn.sigmoid(gates[:, 0 * H:1 * H])
        f_g = jax.nn.sigmoid(gates[:, 1 * H:2 * H])
        g_g = jnp.tanh(gates[:, 2 * H:3 * H])
        o_g = jax.nn.sigmoid(gates[:, 3 * H:4 * H])
        c_new = f_g * c_prev + i_g * g_g
        h_new = o_g * jnp.tanh(c_new)
        # Next layer's input; never leaves VMEM.
        if D == H:
            seq_sc[pl.ds(r, B), :] = h_new
        else:
            seq_sc[pl.ds(r, B), 0:H] = h_new
        return h_new, c_new

    unroll = True if S <= 16 else 8
    h_f, c_f = jax.lax.fori_loop(0, S, step, (h0, c0), unroll=unroll)

    h_out_ref[0] = h_f
    c_out_ref[0] = c_f


def encoder_lstm(emb_flat, w_ih_stack, w_hh_stack, b_stack, *, seq_len, batch):
    """emb_flat: (S*B, D) f32; w_ih: (L, D, G); w_hh: (L, H, G); b: (L, 1, G)."""
    SB, D = emb_flat.shape
    L, _, G = w_ih_stack.shape
    H = w_hh_stack.shape[1]
    S, B = seq_len, batch
    assert SB == S * B

    out_shapes = (
        jax.ShapeDtypeStruct((L, B, H), jnp.float32),   # final hidden per layer
        jax.ShapeDtypeStruct((L, B, H), jnp.float32),   # final cell per layer
    )
    return pl.pallas_call(
        encoder_lstm_kernel,
        out_shape=out_shapes,
        grid_spec=pltpu.PrefetchScalarGridSpec(
            num_scalar_prefetch=0,
            grid=(L,),
            in_specs=[
                pl.BlockSpec(memory_space=pl.ANY),                 # emb (HBM)
                pl.BlockSpec((1, D, G), lambda l: (l, 0, 0)),      # W_ih[l]
                pl.BlockSpec((1, H, G), lambda l: (l, 0, 0)),      # W_hh[l]
                pl.BlockSpec((1, 1, G), lambda l: (l, 0, 0)),      # bias[l]
            ],
            out_specs=[
                pl.BlockSpec((1, B, H), lambda l: (l, 0, 0)),
                pl.BlockSpec((1, B, H), lambda l: (l, 0, 0)),
            ],
            scratch_shapes=[
                pltpu.VMEM((S * B, D), jnp.float32),   # inter-layer activations
                pltpu.VMEM((S * B, G), jnp.float32),   # hoisted input projection
                pltpu.SemaphoreType.DMA(()),           # layer-0 HBM->VMEM copy
            ],
        ),
        compiler_params=pltpu.CompilerParams(
            dimension_semantics=("arbitrary",),        # layers are sequential
            vmem_limit_bytes=32 * 1024 * 1024,
        ),
    )(emb_flat, w_ih_stack, w_hh_stack, b_stack)


# ----------------------------------------------------------------------------
# Parameter packing: dense gate layout (stride H), zero-padded to G lanes and
# D contraction rows; W_ih / W_hh kept separate so the input projection can be
# hoisted out of the time loop.
# ----------------------------------------------------------------------------
def pack_params(raw, embed_dim, hidden_size):
    E, H = embed_dim, hidden_size
    D = max(E, H)                       # shared input-row dim across layers
    G = _round_up(4 * H, 128)           # dense gate slab width
    vocab = raw["embed"].shape[0]

    embed_p = jnp.zeros((vocab, D), jnp.float32).at[:, :E].set(raw["embed"])

    w_ih_list, w_hh_list, b_list = [], [], []
    for layer in raw["lstm"]:
        in_dim = layer["w_ih"].shape[1]
        # PyTorch W_* are (4H, in); transposed columns are already i|f|g|o dense.
        w_ih = jnp.zeros((D, G), jnp.float32).at[:in_dim, :4 * H].set(
            layer["w_ih"].T)
        w_hh = jnp.zeros((H, G), jnp.float32).at[:, :4 * H].set(
            layer["w_hh"].T)
        b = jnp.zeros((1, G), jnp.float32).at[:, :4 * H].set(
            (layer["b_ih"] + layer["b_hh"]).reshape(1, 4 * H))
        w_ih_list.append(w_ih)
        w_hh_list.append(w_hh)
        b_list.append(b)

    return {
        "embed_p": embed_p,                          # (vocab, D)
        "w_ih_stack": jnp.stack(w_ih_list, axis=0),  # (L, D, G)
        "w_hh_stack": jnp.stack(w_hh_list, axis=0),  # (L, H, G)
        "b_stack": jnp.stack(b_list, axis=0),        # (L, 1, G)
        "hidden": H,
    }


def encoder_forward(packed, x_ids):
    """x_ids: (S, B) int32 -> (hidden, cell), each (num_layers, B, H)."""
    S, B = x_ids.shape
    emb = packed["embed_p"][x_ids]                   # (S, B, D) gather in JAX
    emb_flat = emb.reshape(S * B, emb.shape[-1])
    # nn.Dropout is identity in eval mode.
    return encoder_lstm(emb_flat, packed["w_ih_stack"], packed["w_hh_stack"],
                        packed["b_stack"], seq_len=S, batch=B)


# ----------------------------------------------------------------------------
# Pure-JAX reference (high-precision matmuls) for the sanity check.
# ----------------------------------------------------------------------------
def encoder_reference(raw, x_ids):
    emb = raw["embed"][x_ids]
    layer_in = emb
    h_list, c_list = [], []
    for layer in raw["lstm"]:
        H = layer["w_hh"].shape[1]
        B = layer_in.shape[1]
        wih_t = layer["w_ih"].T
        whh_t = layer["w_hh"].T
        bias = (layer["b_ih"] + layer["b_hh"]).reshape(1, 4 * H)

        def step(carry, x_t, wih_t=wih_t, whh_t=whh_t, bias=bias, H=H):
            h, c = carry
            gates = (jnp.dot(x_t, wih_t, precision=jax.lax.Precision.HIGHEST)
                     + jnp.dot(h, whh_t, precision=jax.lax.Precision.HIGHEST)
                     + bias)
            i_g = jax.nn.sigmoid(gates[:, 0 * H:1 * H])
            f_g = jax.nn.sigmoid(gates[:, 1 * H:2 * H])
            g_g = jnp.tanh(gates[:, 2 * H:3 * H])
            o_g = jax.nn.sigmoid(gates[:, 3 * H:4 * H])
            c_new = f_g * c + i_g * g_g
            h_new = o_g * jnp.tanh(c_new)
            return (h_new, c_new), h_new

        init = (jnp.zeros((B, H), jnp.float32), jnp.zeros((B, H), jnp.float32))
        (h, c), outs = jax.lax.scan(step, init, layer_in)
        layer_in = outs
        h_list.append(h)
        c_list.append(c)
    return jnp.stack(h_list), jnp.stack(c_list)


# ----------------------------------------------------------------------------
# Deterministic parameter init (mirrors PyTorch shapes / init ranges).
# ----------------------------------------------------------------------------
def init_params(key, input_size, embed_dim, hidden_size, num_layers):
    keys = jax.random.split(key, 1 + 4 * num_layers)
    params = {"embed": jax.random.normal(keys[0], (input_size, embed_dim),
                                         jnp.float32)}
    k = 1.0 / jnp.sqrt(hidden_size)
    layers = []
    for l in range(num_layers):
        in_dim = embed_dim if l == 0 else hidden_size
        kw = keys[1 + 4 * l: 1 + 4 * (l + 1)]
        layers.append({
            "w_ih": jax.random.uniform(kw[0], (4 * hidden_size, in_dim),
                                       jnp.float32, -k, k),
            "w_hh": jax.random.uniform(kw[1], (4 * hidden_size, hidden_size),
                                       jnp.float32, -k, k),
            "b_ih": jax.random.uniform(kw[2], (4 * hidden_size,),
                                       jnp.float32, -k, k),
            "b_hh": jax.random.uniform(kw[3], (4 * hidden_size,),
                                       jnp.float32, -k, k),
        })
    params["lstm"] = layers
    return params


if __name__ == "__main__":
    # Small shapes consistent with the module's forward.
    input_size = 50      # vocab
    embed_dim = 32
    hidden_size = 32
    num_layers = 2
    seq_len = 8
    batch = 8

    key = jax.random.PRNGKey(0)
    pkey, xkey = jax.random.split(key)
    raw = init_params(pkey, input_size, embed_dim, hidden_size, num_layers)
    packed = pack_params(raw, embed_dim, hidden_size)

    # token ids: (seq_len, batch) int32 (PyTorch nn.LSTM seq-first layout)
    x_ids = jax.random.randint(xkey, (seq_len, batch), 0, input_size,
                               dtype=jnp.int32)

    hidden, cell = encoder_forward(packed, x_ids)
    jax.block_until_ready((hidden, cell))

    # Sanity check against a pure-JAX reference.
    h_ref, c_ref = encoder_reference(raw, x_ids)
    assert hidden.shape == (num_layers, batch, hidden_size)
    assert cell.shape == (num_layers, batch, hidden_size)
    assert jnp.allclose(hidden, h_ref, atol=2e-4, rtol=2e-4)
    assert jnp.allclose(cell, c_ref, atol=2e-4, rtol=2e-4)

    print("KERNEL_OK")
</pallas_src>

<mosaic_0001>
module attributes {stable_mosaic.version = 11 : i64} {
  func.func @encoder_lstm_kernel(%arg0: i32, %arg1: memref<64x32xf32, #tpu.memory_space<any>>, %arg2: memref<1x32x128xf32, #tpu.memory_space<vmem>>, %arg3: memref<1x32x128xf32, #tpu.memory_space<vmem>>, %arg4: memref<1x1x128xf32, #tpu.memory_space<vmem>>, %arg5: memref<1x8x32xf32, #tpu.memory_space<vmem>>, %arg6: memref<1x8x32xf32, #tpu.memory_space<vmem>>, %arg7: memref<64x32xf32, #tpu.memory_space<vmem>>, %arg8: memref<64x128xf32, #tpu.memory_space<vmem>>, %arg9: memref<!tpu.dma_semaphore, #tpu.memory_space<semaphore_mem>>) attributes {dimension_semantics = [#tpu.dimension_semantics<arbitrary>], iteration_bounds = array<i64: 2>, scalar_prefetch = 0 : i64, scratch_operands = 3 : i64, tpu.core_type = #tpu.core_type<tc>, window_params = [{}, {transform_indices = @transform_1, window_bounds = array<i64: 1, 32, 128>}, {transform_indices = @transform_2, window_bounds = array<i64: 1, 32, 128>}, {transform_indices = @transform_3, window_bounds = array<i64: 1, 1, 128>}, {transform_indices = @transform_4, window_bounds = array<i64: 1, 8, 32>}, {transform_indices = @transform_5, window_bounds = array<i64: 1, 8, 32>}]} {
    %c0_i32 = arith.constant 0 : i32
    %0 = arith.cmpi eq, %arg0, %c0_i32 : i32
    %1 = arith.extui %0 : i1 to i32
    %c0_i32_0 = arith.constant 0 : i32
    %2 = arith.cmpi ne, %1, %c0_i32_0 : i32
    scf.if %2 {
      tpu.enqueue_dma source(%arg1 : memref<64x32xf32, #tpu.memory_space<any>>) target(%arg7 : memref<64x32xf32, #tpu.memory_space<vmem>>) target_semaphore(%arg9 : memref<!tpu.dma_semaphore, #tpu.memory_space<semaphore_mem>>)
      tpu.wait_dma2 semaphore(%arg9 : memref<!tpu.dma_semaphore, #tpu.memory_space<semaphore_mem>>) src(%arg1 : memref<64x32xf32, #tpu.memory_space<any>>) dst(%arg7 : memref<64x32xf32, #tpu.memory_space<vmem>>)
    } else {
    }
    %c0 = arith.constant 0 : index
    %c0_1 = arith.constant 0 : index
    %3 = vector.load %arg7[%c0, %c0_1] : memref<64x32xf32, #tpu.memory_space<vmem>>, vector<64x32xf32>
    %c0_2 = arith.constant 0 : index
    %c0_3 = arith.constant 0 : index
    %c0_4 = arith.constant 0 : index
    %4 = vector.load %arg2[%c0_2, %c0_3, %c0_4] : memref<1x32x128xf32, #tpu.memory_space<vmem>>, vector<1x32x128xf32>
    %5 = vector.shape_cast %4 : vector<1x32x128xf32> to vector<32x128xf32>
    %cst = arith.constant dense<0.000000e+00> : vector<64x128xf32>
    %6 = tpu.matmul %3, %5, %cst {dimension_numbers = #tpu.dot_dimension_numbers<[1], [0], [0], [1], [0, 0, 1, 1], [], []>} : vector<64x32xf32>, vector<32x128xf32>, vector<64x128xf32> -> vector<64x128xf32>
    %c0_5 = arith.constant 0 : index
    %c0_6 = arith.constant 0 : index
    %c0_7 = arith.constant 0 : index
    %7 = vector.load %arg4[%c0_5, %c0_6, %c0_7] : memref<1x1x128xf32, #tpu.memory_space<vmem>>, vector<1x1x128xf32>
    %8 = vector.shape_cast %7 : vector<1x1x128xf32> to vector<1x128xf32>
    %9 = vector.broadcast %8 : vector<1x128xf32> to vector<64x128xf32>
    %10 = arith.addf %6, %9 : vector<64x128xf32>
    %c0_8 = arith.constant 0 : index
    %c0_9 = arith.constant 0 : index
    %11 = vector.load %arg8[%c0_8, %c0_9] : memref<64x128xf32, #tpu.memory_space<vmem>>, vector<64x128xf32>
    tpu.vector_store %arg8[%c0_8, %c0_9], %10 {strides = array<i32>} : memref<64x128xf32, #tpu.memory_space<vmem>>, vector<64x128xf32>,
    %c0_10 = arith.constant 0 : index
    %c0_11 = arith.constant 0 : index
    %c0_12 = arith.constant 0 : index
    %12 = vector.load %arg3[%c0_10, %c0_11, %c0_12] : memref<1x32x128xf32, #tpu.memory_space<vmem>>, vector<1x32x128xf32>
    %13 = vector.shape_cast %12 : vector<1x32x128xf32> to vector<32x128xf32>
    %cst_13 = arith.constant 0.000000e+00 : f32
    %14 = vector.broadcast %cst_13 : f32 to vector<8x32xf32>
    %cst_14 = arith.constant 0.000000e+00 : f32
    %15 = vector.broadcast %cst_14 : f32 to vector<8x32xf32>
    %c0_i32_15 = arith.constant 0 : i32
    %c8_i32 = arith.constant 8 : i32
    %16 = arith.muli %c0_i32_15, %c8_i32 : i32
    %17 = tpu.assume_multiple %16, 8 : i32
    %18 = arith.index_cast %17 : i32 to index
    %c0_16 = arith.constant 0 : index
    %19 = vector.load %arg8[%18, %c0_16] : memref<64x128xf32, #tpu.memory_space<vmem>>, vector<8x128xf32>
    %cst_17 = arith.constant dense<0.000000e+00> : vector<8x128xf32>
    %20 = tpu.matmul %14, %13, %cst_17 {dimension_numbers = #tpu.dot_dimension_numbers<[1], [0], [0], [1], [0, 0, 1, 1], [], []>} : vector<8x32xf32>, vector<32x128xf32>, vector<8x128xf32> -> vector<8x128xf32>
    %21 = arith.addf %19, %20 : vector<8x128xf32>
    %22 = vector.extract_strided_slice %21 {offsets = [0, 0], sizes = [8, 32], strides = [1, 1]} : vector<8x128xf32> to vector<8x32xf32>
    %23 = arith.negf %22 : vector<8x32xf32>
    %24 = math.exp %23 : vector<8x32xf32>
    %cst_18 = arith.constant 1.000000e+00 : f32
    %25 = vector.broadcast %cst_18 : f32 to vector<8x32xf32>
    %26 = arith.addf %25, %24 : vector<8x32xf32>
    %27 = arith.divf %25, %26 : vector<8x32xf32>
    %28 = vector.extract_strided_slice %21 {offsets = [0, 32], sizes = [8, 32], strides = [1, 1]} : vector<8x128xf32> to vector<8x32xf32>
    %29 = arith.negf %28 : vector<8x32xf32>
    %30 = math.exp %29 : vector<8x32xf32>
    %cst_19 = arith.constant 1.000000e+00 : f32
    %31 = vector.broadcast %cst_19 : f32 to vector<8x32xf32>
    %32 = arith.addf %31, %30 : vector<8x32xf32>
    %33 = arith.divf %31, %32 : vector<8x32xf32>
    %34 = vector.extract_strided_slice %21 {offsets = [0, 64], sizes = [8, 32], strides = [1, 1]} : vector<8x128xf32> to vector<8x32xf32>
    %35 = math.tanh %34 : vector<8x32xf32>
    %36 = vector.extract_strided_slice %21 {offsets = [0, 96], sizes = [8, 32], strides = [1, 1]} : vector<8x128xf32> to vector<8x32xf32>
    %37 = arith.negf %36 : vector<8x32xf32>
    %38 = math.exp %37 : vector<8x32xf32>
    %cst_20 = arith.constant 1.000000e+00 : f32
    %39 = vector.broadcast %cst_20 : f32 to vector<8x32xf32>
    %40 = arith.addf %39, %38 : vector<8x32xf32>
    %41 = arith.divf %39, %40 : vector<8x32xf32>
    %42 = arith.mulf %33, %15 : vector<8x32xf32>
    %43 = arith.mulf %27, %35 : vector<8x32xf32>
    %44 = arith.addf %42, %43 : vector<8x32xf32>
    %45 = math.tanh %44 : vector<8x32xf32>
    %46 = arith.mulf %41, %45 : vector<8x32xf32>
    %47 = arith.index_cast %17 : i32 to index
    %c0_21 = arith.constant 0 : index
    %48 = vector.load %arg7[%47, %c0_21] : memref<64x32xf32, #tpu.memory_space<vmem>>, vector<8x32xf32>
    tpu.vector_store %arg7[%47, %c0_21], %46 {strides = array<i32>} : memref<64x32xf32, #tpu.memory_space<vmem>>, vector<8x32xf32>,
    %c1_i32 = arith.constant 1 : i32
    %c8_i32_22 = arith.constant 8 : i32
    %49 = arith.muli %c1_i32, %c8_i32_22 : i32
    %50 = tpu.assume_multiple %49, 8 : i32
    %51 = arith.index_cast %50 : i32 to index
    %c0_23 = arith.constant 0 : index
    %52 = vector.load %arg8[%51, %c0_23] : memref<64x128xf32, #tpu.memory_space<vmem>>, vector<8x128xf32>
    %cst_24 = arith.constant dense<0.000000e+00> : vector<8x128xf32>
    %53 = tpu.matmul %46, %13, %cst_24 {dimension_numbers = #tpu.dot_dimension_numbers<[1], [0], [0], [1], [0, 0, 1, 1], [], []>} : vector<8x32xf32>, vector<32x128xf32>, vector<8x128xf32> -> vector<8x128xf32>
    %54 = arith.addf %52, %53 : vector<8x128xf32>
    %55 = vector.extract_strided_slice %54 {offsets = [0, 0], sizes = [8, 32], strides = [1, 1]} : vector<8x128xf32> to vector<8x32xf32>
    %56 = arith.negf %55 : vector<8x32xf32>
    %57 = math.exp %56 : vector<8x32xf32>
    %cst_25 = arith.constant 1.000000e+00 : f32
    %58 = vector.broadcast %cst_25 : f32 to vector<8x32xf32>
    %59 = arith.addf %58, %57 : vector<8x32xf32>
    %60 = arith.divf %58, %59 : vector<8x32xf32>
    %61 = vector.extract_strided_slice %54 {offsets = [0, 32], sizes = [8, 32], strides = [1, 1]} : vector<8x128xf32> to vector<8x32xf32>
    %62 = arith.negf %61 : vector<8x32xf32>
    %63 = math.exp %62 : vector<8x32xf32>
    %cst_26 = arith.constant 1.000000e+00 : f32
    %64 = vector.broadcast %cst_26 : f32 to vector<8x32xf32>
    %65 = arith.addf %64, %63 : vector<8x32xf32>
    %66 = arith.divf %64, %65 : vector<8x32xf32>
    %67 = vector.extract_strided_slice %54 {offsets = [0, 64], sizes = [8, 32], strides = [1, 1]} : vector<8x128xf32> to vector<8x32xf32>
    %68 = math.tanh %67 : vector<8x32xf32>
    %69 = vector.extract_strided_slice %54 {offsets = [0, 96], sizes = [8, 32], strides = [1, 1]} : vector<8x128xf32> to vector<8x32xf32>
    %70 = arith.negf %69 : vector<8x32xf32>
    %71 = math.exp %70 : vector<8x32xf32>
    %cst_27 = arith.constant 1.000000e+00 : f32
    %72 = vector.broadcast %cst_27 : f32 to vector<8x32xf32>
    %73 = arith.addf %72, %71 : vector<8x32xf32>
    %74 = arith.divf %72, %73 : vector<8x32xf32>
    %75 = arith.mulf %66, %44 : vector<8x32xf32>
    %76 = arith.mulf %60, %68 : vector<8x32xf32>
    %77 = arith.addf %75, %76 : vector<8x32xf32>
    %78 = math.tanh %77 : vector<8x32xf32>
    %79 = arith.mulf %74, %78 : vector<8x32xf32>
    %80 = arith.index_cast %50 : i32 to index
    %c0_28 = arith.constant 0 : index
    %81 = vector.load %arg7[%80, %c0_28] : memref<64x32xf32, #tpu.memory_space<vmem>>, vector<8x32xf32>
    tpu.vector_store %arg7[%80, %c0_28], %79 {strides = array<i32>} : memref<64x32xf32, #tpu.memory_space<vmem>>, vector<8x32xf32>,
    %c2_i32 = arith.constant 2 : i32
    %c8_i32_29 = arith.constant 8 : i32
    %82 = arith.muli %c2_i32, %c8_i32_29 : i32
    %83 = tpu.assume_multiple %82, 8 : i32
    %84 = arith.index_cast %83 : i32 to index
    %c0_30 = arith.constant 0 : index
    %85 = vector.load %arg8[%84, %c0_30] : memref<64x128xf32, #tpu.memory_space<vmem>>, vector<8x128xf32>
    %cst_31 = arith.constant dense<0.000000e+00> : vector<8x128xf32>
    %86 = tpu.matmul %79, %13, %cst_31 {dimension_numbers = #tpu.dot_dimension_numbers<[1], [0], [0], [1], [0, 0, 1, 1], [], []>} : vector<8x32xf32>, vector<32x128xf32>, vector<8x128xf32> -> vector<8x128xf32>
    %87 = arith.addf %85, %86 : vector<8x128xf32>
    %88 = vector.extract_strided_slice %87 {offsets = [0, 0], sizes = [8, 32], strides = [1, 1]} : vector<8x128xf32> to vector<8x32xf32>
    %89 = arith.negf %88 : vector<8x32xf32>
    %90 = math.exp %89 : vector<8x32xf32>
    %cst_32 = arith.constant 1.000000e+00 : f32
    %91 = vector.broadcast %cst_32 : f32 to vector<8x32xf32>
    %92 = arith.addf %91, %90 : vector<8x32xf32>
    %93 = arith.divf %91, %92 : vector<8x32xf32>
    %94 = vector.extract_strided_slice %87 {offsets = [0, 32], sizes = [8, 32], strides = [1, 1]} : vector<8x128xf32> to vector<8x32xf32>
    %95 = arith.negf %94 : vector<8x32xf32>
    %96 = math.exp %95 : vector<8x32xf32>
    %cst_33 = arith.constant 1.000000e+00 : f32
    %97 = vector.broadcast %cst_33 : f32 to vector<8x32xf32>
    %98 = arith.addf %97, %96 : vector<8x32xf32>
    %99 = arith.divf %97, %98 : vector<8x32xf32>
    %100 = vector.extract_strided_slice %87 {offsets = [0, 64], sizes = [8, 32], strides = [1, 1]} : vector<8x128xf32> to vector<8x32xf32>
    %101 = math.tanh %100 : vector<8x32xf32>
    %102 = vector.extract_strided_slice %87 {offsets = [0, 96], sizes = [8, 32], strides = [1, 1]} : vector<8x128xf32> to vector<8x32xf32>
    %103 = arith.negf %102 : vector<8x32xf32>
    %104 = math.exp %103 : vector<8x32xf32>
    %cst_34 = arith.constant 1.000000e+00 : f32
    %105 = vector.broadcast %cst_34 : f32 to vector<8x32xf32>
    %106 = arith.addf %105, %104 : vector<8x32xf32>
    %107 = arith.divf %105, %106 : vector<8x32xf32>
    %108 = arith.mulf %99, %77 : vector<8x32xf32>
    %109 = arith.mulf %93, %101 : vector<8x32xf32>
    %110 = arith.addf %108, %109 : vector<8x32xf32>
    %111 = math.tanh %110 : vector<8x32xf32>
    %112 = arith.mulf %107, %111 : vector<8x32xf32>
    %113 = arith.index_cast %83 : i32 to index
    %c0_35 = arith.constant 0 : index
    %114 = vector.load %arg7[%113, %c0_35] : memref<64x32xf32, #tpu.memory_space<vmem>>, vector<8x32xf32>
    tpu.vector_store %arg7[%113, %c0_35], %112 {strides = array<i32>} : memref<64x32xf32, #tpu.memory_space<vmem>>, vector<8x32xf32>,
    %c3_i32 = arith.constant 3 : i32
    %c8_i32_36 = arith.constant 8 : i32
    %115 = arith.muli %c3_i32, %c8_i32_36 : i32
    %116 = tpu.assume_multiple %115, 8 : i32
    %117 = arith.index_cast %116 : i32 to index
    %c0_37 = arith.constant 0 : index
    %118 = vector.load %arg8[%117, %c0_37] : memref<64x128xf32, #tpu.memory_space<vmem>>, vector<8x128xf32>
    %cst_38 = arith.constant dense<0.000000e+00> : vector<8x128xf32>
    %119 = tpu.matmul %112, %13, %cst_38 {dimension_numbers = #tpu.dot_dimension_numbers<[1], [0], [0], [1], [0, 0, 1, 1], [], []>} : vector<8x32xf32>, vector<32x128xf32>, vector<8x128xf32> -> vector<8x128xf32>
    %120 = arith.addf %118, %119 : vector<8x128xf32>
    %121 = vector.extract_strided_slice %120 {offsets = [0, 0], sizes = [8, 32], strides = [1, 1]} : vector<8x128xf32> to vector<8x32xf32>
    %122 = arith.negf %121 : vector<8x32xf32>
    %123 = math.exp %122 : vector<8x32xf32>
    %cst_39 = arith.constant 1.000000e+00 : f32
    %124 = vector.broadcast %cst_39 : f32 to vector<8x32xf32>
    %125 = arith.addf %124, %123 : vector<8x32xf32>
    %126 = arith.divf %124, %125 : vector<8x32xf32>
    %127 = vector.extract_strided_slice %120 {offsets = [0, 32], sizes = [8, 32], strides = [1, 1]} : vector<8x128xf32> to vector<8x32xf32>
    %128 = arith.negf %127 : vector<8x32xf32>
    %129 = math.exp %128 : vector<8x32xf32>
    %cst_40 = arith.constant 1.000000e+00 : f32
    %130 = vector.broadcast %cst_40 : f32 to vector<8x32xf32>
    %131 = arith.addf %130, %129 : vector<8x32xf32>
    %132 = arith.divf %130, %131 : vector<8x32xf32>
    %133 = vector.extract_strided_slice %120 {offsets = [0, 64], sizes = [8, 32], strides = [1, 1]} : vector<8x128xf32> to vector<8x32xf32>
    %134 = math.tanh %133 : vector<8x32xf32>
    %135 = vector.extract_strided_slice %120 {offsets = [0, 96], sizes = [8, 32], strides = [1, 1]} : vector<8x128xf32> to vector<8x32xf32>
    %136 = arith.negf %135 : vector<8x32xf32>
    %137 = math.exp %136 : vector<8x32xf32>
    %cst_41 = arith.constant 1.000000e+00 : f32
    %138 = vector.broadcast %cst_41 : f32 to vector<8x32xf32>
    %139 = arith.addf %138, %137 : vector<8x32xf32>
    %140 = arith.divf %138, %139 : vector<8x32xf32>
    %141 = arith.mulf %132, %110 : vector<8x32xf32>
    %142 = arith.mulf %126, %134 : vector<8x32xf32>
    %143 = arith.addf %141, %142 : vector<8x32xf32>
    %144 = math.tanh %143 : vector<8x32xf32>
    %145 = arith.mulf %140, %144 : vector<8x32xf32>
    %146 = arith.index_cast %116 : i32 to index
    %c0_42 = arith.constant 0 : index
    %147 = vector.load %arg7[%146, %c0_42] : memref<64x32xf32, #tpu.memory_space<vmem>>, vector<8x32xf32>
    tpu.vector_store %arg7[%146, %c0_42], %145 {strides = array<i32>} : memref<64x32xf32, #tpu.memory_space<vmem>>, vector<8x32xf32>,
    %c4_i32 = arith.constant 4 : i32
    %c8_i32_43 = arith.constant 8 : i32
    %148 = arith.muli %c4_i32, %c8_i32_43 : i32
    %149 = tpu.assume_multiple %148, 8 : i32
    %150 = arith.index_cast %149 : i32 to index
    %c0_44 = arith.constant 0 : index
    %151 = vector.load %arg8[%150, %c0_44] : memref<64x128xf32, #tpu.memory_space<vmem>>, vector<8x128xf32>
    %cst_45 = arith.constant dense<0.000000e+00> : vector<8x128xf32>
    %152 = tpu.matmul %145, %13, %cst_45 {dimension_numbers = #tpu.dot_dimension_numbers<[1], [0], [0], [1], [0, 0, 1, 1], [], []>} : vector<8x32xf32>, vector<32x128xf32>, vector<8x128xf32> -> vector<8x128xf32>
    %153 = arith.addf %151, %152 : vector<8x128xf32>
    %154 = vector.extract_strided_slice %153 {offsets = [0, 0], sizes = [8, 32], strides = [1, 1]} : vector<8x128xf32> to vector<8x32xf32>
    %155 = arith.negf %154 : vector<8x32xf32>
    %156 = math.exp %155 : vector<8x32xf32>
    %cst_46 = arith.constant 1.000000e+00 : f32
    %157 = vector.broadcast %cst_46 : f32 to vector<8x32xf32>
    %158 = arith.addf %157, %156 : vector<8x32xf32>
    %159 = arith.divf %157, %158 : vector<8x32xf32>
    %160 = vector.extract_strided_slice %153 {offsets = [0, 32], sizes = [8, 32], strides = [1, 1]} : vector<8x128xf32> to vector<8x32xf32>
    %161 = arith.negf %160 : vector<8x32xf32>
    %162 = math.exp %161 : vector<8x32xf32>
    %cst_47 = arith.constant 1.000000e+00 : f32
    %163 = vector.broadcast %cst_47 : f32 to vector<8x32xf32>
    %164 = arith.addf %163, %162 : vector<8x32xf32>
    %165 = arith.divf %163, %164 : vector<8x32xf32>
    %166 = vector.extract_strided_slice %153 {offsets = [0, 64], sizes = [8, 32], strides = [1, 1]} : vector<8x128xf32> to vector<8x32xf32>
    %167 = math.tanh %166 : vector<8x32xf32>
    %168 = vector.extract_strided_slice %153 {offsets = [0, 96], sizes = [8, 32], strides = [1, 1]} : vector<8x128xf32> to vector<8x32xf32>
    %169 = arith.negf %168 : vector<8x32xf32>
    %170 = math.exp %169 : vector<8x32xf32>
    %cst_48 = arith.constant 1.000000e+00 : f32
    %171 = vector.broadcast %cst_48 : f32 to vector<8x32xf32>
    %172 = arith.addf %171, %170 : vector<8x32xf32>
    %173 = arith.divf %171, %172 : vector<8x32xf32>
    %174 = arith.mulf %165, %143 : vector<8x32xf32>
    %175 = arith.mulf %159, %167 : vector<8x32xf32>
    %176 = arith.addf %174, %175 : vector<8x32xf32>
    %177 = math.tanh %176 : vector<8x32xf32>
    %178 = arith.mulf %173, %177 : vector<8x32xf32>
    %179 = arith.index_cast %149 : i32 to index
    %c0_49 = arith.constant 0 : index
    %180 = vector.load %arg7[%179, %c0_49] : memref<64x32xf32, #tpu.memory_space<vmem>>, vector<8x32xf32>
    tpu.vector_store %arg7[%179, %c0_49], %178 {strides = array<i32>} : memref<64x32xf32, #tpu.memory_space<vmem>>, vector<8x32xf32>,
    %c5_i32 = arith.constant 5 : i32
    %c8_i32_50 = arith.constant 8 : i32
    %181 = arith.muli %c5_i32, %c8_i32_50 : i32
    %182 = tpu.assume_multiple %181, 8 : i32
    %183 = arith.index_cast %182 : i32 to index
    %c0_51 = arith.constant 0 : index
    %184 = vector.load %arg8[%183, %c0_51] : memref<64x128xf32, #tpu.memory_space<vmem>>, vector<8x128xf32>
    %cst_52 = arith.constant dense<0.000000e+00> : vector<8x128xf32>
    %185 = tpu.matmul %178, %13, %cst_52 {dimension_numbers = #tpu.dot_dimension_numbers<[1], [0], [0], [1], [0, 0, 1, 1], [], []>} : vector<8x32xf32>, vector<32x128xf32>, vector<8x128xf32> -> vector<8x128xf32>
    %186 = arith.addf %184, %185 : vector<8x128xf32>
    %187 = vector.extract_strided_slice %186 {offsets = [0, 0], sizes = [8, 32], strides = [1, 1]} : vector<8x128xf32> to vector<8x32xf32>
    %188 = arith.negf %187 : vector<8x32xf32>
    %189 = math.exp %188 : vector<8x32xf32>
    %cst_53 = arith.constant 1.000000e+00 : f32
    %190 = vector.broadcast %cst_53 : f32 to vector<8x32xf32>
    %191 = arith.addf %190, %189 : vector<8x32xf32>
    %192 = arith.divf %190, %191 : vector<8x32xf32>
    %193 = vector.extract_strided_slice %186 {offsets = [0, 32], sizes = [8, 32], strides = [1, 1]} : vector<8x128xf32> to vector<8x32xf32>
    %194 = arith.negf %193 : vector<8x32xf32>
    %195 = math.exp %194 : vector<8x32xf32>
    %cst_54 = arith.constant 1.000000e+00 : f32
    %196 = vector.broadcast %cst_54 : f32 to vector<8x32xf32>
    %197 = arith.addf %196, %195 : vector<8x32xf32>
    %198 = arith.divf %196, %197 : vector<8x32xf32>
    %199 = vector.extract_strided_slice %186 {offsets = [0, 64], sizes = [8, 32], strides = [1, 1]} : vector<8x128xf32> to vector<8x32xf32>
    %200 = math.tanh %199 : vector<8x32xf32>
    %201 = vector.extract_strided_slice %186 {offsets = [0, 96], sizes = [8, 32], strides = [1, 1]} : vector<8x128xf32> to vector<8x32xf32>
    %202 = arith.negf %201 : vector<8x32xf32>
    %203 = math.exp %202 : vector<8x32xf32>
    %cst_55 = arith.constant 1.000000e+00 : f32
    %204 = vector.broadcast %cst_55 : f32 to vector<8x32xf32>
    %205 = arith.addf %204, %203 : vector<8x32xf32>
    %206 = arith.divf %204, %205 : vector<8x32xf32>
    %207 = arith.mulf %198, %176 : vector<8x32xf32>
    %208 = arith.mulf %192, %200 : vector<8x32xf32>
    %209 = arith.addf %207, %208 : vector<8x32xf32>
    %210 = math.tanh %209 : vector<8x32xf32>
    %211 = arith.mulf %206, %210 : vector<8x32xf32>
    %212 = arith.index_cast %182 : i32 to index
    %c0_56 = arith.constant 0 : index
    %213 = vector.load %arg7[%212, %c0_56] : memref<64x32xf32, #tpu.memory_space<vmem>>, vector<8x32xf32>
    tpu.vector_store %arg7[%212, %c0_56], %211 {strides = array<i32>} : memref<64x32xf32, #tpu.memory_space<vmem>>, vector<8x32xf32>,
    %c6_i32 = arith.constant 6 : i32
    %c8_i32_57 = arith.constant 8 : i32
    %214 = arith.muli %c6_i32, %c8_i32_57 : i32
    %215 = tpu.assume_multiple %214, 8 : i32
    %216 = arith.index_cast %215 : i32 to index
    %c0_58 = arith.constant 0 : index
    %217 = vector.load %arg8[%216, %c0_58] : memref<64x128xf32, #tpu.memory_space<vmem>>, vector<8x128xf32>
    %cst_59 = arith.constant dense<0.000000e+00> : vector<8x128xf32>
    %218 = tpu.matmul %211, %13, %cst_59 {dimension_numbers = #tpu.dot_dimension_numbers<[1], [0], [0], [1], [0, 0, 1, 1], [], []>} : vector<8x32xf32>, vector<32x128xf32>, vector<8x128xf32> -> vector<8x128xf32>
    %219 = arith.addf %217, %218 : vector<8x128xf32>
    %220 = vector.extract_strided_slice %219 {offsets = [0, 0], sizes = [8, 32], strides = [1, 1]} : vector<8x128xf32> to vector<8x32xf32>
    %221 = arith.negf %220 : vector<8x32xf32>
    %222 = math.exp %221 : vector<8x32xf32>
    %cst_60 = arith.constant 1.000000e+00 : f32
    %223 = vector.broadcast %cst_60 : f32 to vector<8x32xf32>
    %224 = arith.addf %223, %222 : vector<8x32xf32>
    %225 = arith.divf %223, %224 : vector<8x32xf32>
    %226 = vector.extract_strided_slice %219 {offsets = [0, 32], sizes = [8, 32], strides = [1, 1]} : vector<8x128xf32> to vector<8x32xf32>
    %227 = arith.negf %226 : vector<8x32xf32>
    %228 = math.exp %227 : vector<8x32xf32>
    %cst_61 = arith.constant 1.000000e+00 : f32
    %229 = vector.broadcast %cst_61 : f32 to vector<8x32xf32>
    %230 = arith.addf %229, %228 : vector<8x32xf32>
    %231 = arith.divf %229, %230 : vector<8x32xf32>
    %232 = vector.extract_strided_slice %219 {offsets = [0, 64], sizes = [8, 32], strides = [1, 1]} : vector<8x128xf32> to vector<8x32xf32>
    %233 = math.tanh %232 : vector<8x32xf32>
    %234 = vector.extract_strided_slice %219 {offsets = [0, 96], sizes = [8, 32], strides = [1, 1]} : vector<8x128xf32> to vector<8x32xf32>
    %235 = arith.negf %234 : vector<8x32xf32>
    %236 = math.exp %235 : vector<8x32xf32>
    %cst_62 = arith.constant 1.000000e+00 : f32
    %237 = vector.broadcast %cst_62 : f32 to vector<8x32xf32>
    %238 = arith.addf %237, %236 : vector<8x32xf32>
    %239 = arith.divf %237, %238 : vector<8x32xf32>
    %240 = arith.mulf %231, %209 : vector<8x32xf32>
    %241 = arith.mulf %225, %233 : vector<8x32xf32>
    %242 = arith.addf %240, %241 : vector<8x32xf32>
    %243 = math.tanh %242 : vector<8x32xf32>
    %244 = arith.mulf %239, %243 : vector<8x32xf32>
    %245 = arith.index_cast %215 : i32 to index
    %c0_63 = arith.constant 0 : index
    %246 = vector.load %arg7[%245, %c0_63] : memref<64x32xf32, #tpu.memory_space<vmem>>, vector<8x32xf32>
    tpu.vector_store %arg7[%245, %c0_63], %244 {strides = array<i32>} : memref<64x32xf32, #tpu.memory_space<vmem>>, vector<8x32xf32>,
    %c7_i32 = arith.constant 7 : i32
    %c8_i32_64 = arith.constant 8 : i32
    %247 = arith.muli %c7_i32, %c8_i32_64 : i32
    %248 = tpu.assume_multiple %247, 8 : i32
    %249 = arith.index_cast %248 : i32 to index
    %c0_65 = arith.constant 0 : index
    %250 = vector.load %arg8[%249, %c0_65] : memref<64x128xf32, #tpu.memory_space<vmem>>, vector<8x128xf32>
    %cst_66 = arith.constant dense<0.000000e+00> : vector<8x128xf32>
    %251 = tpu.matmul %244, %13, %cst_66 {dimension_numbers = #tpu.dot_dimension_numbers<[1], [0], [0], [1], [0, 0, 1, 1], [], []>} : vector<8x32xf32>, vector<32x128xf32>, vector<8x128xf32> -> vector<8x128xf32>
    %252 = arith.addf %250, %251 : vector<8x128xf32>
    %253 = vector.extract_strided_slice %252 {offsets = [0, 0], sizes = [8, 32], strides = [1, 1]} : vector<8x128xf32> to vector<8x32xf32>
    %254 = arith.negf %253 : vector<8x32xf32>
    %255 = math.exp %254 : vector<8x32xf32>
    %cst_67 = arith.constant 1.000000e+00 : f32
    %256 = vector.broadcast %cst_67 : f32 to vector<8x32xf32>
    %257 = arith.addf %256, %255 : vector<8x32xf32>
    %258 = arith.divf %256, %257 : vector<8x32xf32>
    %259 = vector.extract_strided_slice %252 {offsets = [0, 32], sizes = [8, 32], strides = [1, 1]} : vector<8x128xf32> to vector<8x32xf32>
    %260 = arith.negf %259 : vector<8x32xf32>
    %261 = math.exp %260 : vector<8x32xf32>
    %cst_68 = arith.constant 1.000000e+00 : f32
    %262 = vector.broadcast %cst_68 : f32 to vector<8x32xf32>
    %263 = arith.addf %262, %261 : vector<8x32xf32>
    %264 = arith.divf %262, %263 : vector<8x32xf32>
    %265 = vector.extract_strided_slice %252 {offsets = [0, 64], sizes = [8, 32], strides = [1, 1]} : vector<8x128xf32> to vector<8x32xf32>
    %266 = math.tanh %265 : vector<8x32xf32>
    %267 = vector.extract_strided_slice %252 {offsets = [0, 96], sizes = [8, 32], strides = [1, 1]} : vector<8x128xf32> to vector<8x32xf32>
    %268 = arith.negf %267 : vector<8x32xf32>
    %269 = math.exp %268 : vector<8x32xf32>
    %cst_69 = arith.constant 1.000000e+00 : f32
    %270 = vector.broadcast %cst_69 : f32 to vector<8x32xf32>
    %271 = arith.addf %270, %269 : vector<8x32xf32>
    %272 = arith.divf %270, %271 : vector<8x32xf32>
    %273 = arith.mulf %264, %242 : vector<8x32xf32>
    %274 = arith.mulf %258, %266 : vector<8x32xf32>
    %275 = arith.addf %273, %274 : vector<8x32xf32>
    %276 = math.tanh %275 : vector<8x32xf32>
    %277 = arith.mulf %272, %276 : vector<8x32xf32>
    %278 = arith.index_cast %248 : i32 to index
    %c0_70 = arith.constant 0 : index
    %279 = vector.load %arg7[%278, %c0_70] : memref<64x32xf32, #tpu.memory_space<vmem>>, vector<8x32xf32>
    tpu.vector_store %arg7[%278, %c0_70], %277 {strides = array<i32>} : memref<64x32xf32, #tpu.memory_space<vmem>>, vector<8x32xf32>,
    %c8_i32_71 = arith.constant 8 : i32
    %c0_72 = arith.constant 0 : index
    %c0_73 = arith.constant 0 : index
    %c0_74 = arith.constant 0 : index
    %280 = vector.load %arg5[%c0_72, %c0_73, %c0_74] : memref<1x8x32xf32, #tpu.memory_space<vmem>>, vector<1x8x32xf32>
    %281 = vector.shape_cast %280 : vector<1x8x32xf32> to vector<8x32xf32>
    %282 = vector.shape_cast %277 : vector<8x32xf32> to vector<1x8x32xf32>
    tpu.vector_store %arg5[%c0_72, %c0_73, %c0_74], %282 {strides = array<i32>} : memref<1x8x32xf32, #tpu.memory_space<vmem>>, vector<1x8x32xf32>,
    %c0_75 = arith.constant 0 : index
    %c0_76 = arith.constant 0 : index
    %c0_77 = arith.constant 0 : index
    %283 = vector.load %arg6[%c0_75, %c0_76, %c0_77] : memref<1x8x32xf32, #tpu.memory_space<vmem>>, vector<1x8x32xf32>
    %284 = vector.shape_cast %283 : vector<1x8x32xf32> to vector<8x32xf32>
    %285 = vector.shape_cast %275 : vector<8x32xf32> to vector<1x8x32xf32>
    tpu.vector_store %arg6[%c0_75, %c0_76, %c0_77], %285 {strides = array<i32>} : memref<1x8x32xf32, #tpu.memory_space<vmem>>, vector<1x8x32xf32>,
    return
  }
  func.func @transform_1(%arg0: i32) -> (i32, i32, i32) {
    %c0_i32 = arith.constant 0 : i32
    %c0_i32_0 = arith.constant 0 : i32
    %c0_i32_1 = arith.constant 0 : i32
    return %arg0, %c0_i32, %c0_i32_0 : i32, i32, i32
  }
  func.func @transform_2(%arg0: i32) -> (i32, i32, i32) {
    %c0_i32 = arith.constant 0 : i32
    %c0_i32_0 = arith.constant 0 : i32
    %c0_i32_1 = arith.constant 0 : i32
    return %arg0, %c0_i32, %c0_i32_0 : i32, i32, i32
  }
  func.func @transform_3(%arg0: i32) -> (i32, i32, i32) {
    %c0_i32 = arith.constant 0 : i32
    %c0_i32_0 = arith.constant 0 : i32
    %c0_i32_1 = arith.constant 0 : i32
    return %arg0, %c0_i32, %c0_i32_0 : i32, i32, i32
  }
  func.func @transform_4(%arg0: i32) -> (i32, i32, i32) {
    %c0_i32 = arith.constant 0 : i32
    %c0_i32_0 = arith.constant 0 : i32
    %c0_i32_1 = arith.constant 0 : i32
    return %arg0, %c0_i32, %c0_i32_0 : i32, i32, i32
  }
  func.func @transform_5(%arg0: i32) -> (i32, i32, i32) {
    %c0_i32 = arith.constant 0 : i32
    %c0_i32_0 = arith.constant 0 : i32
    %c0_i32_1 = arith.constant 0 : i32
    return %arg0, %c0_i32, %c0_i32_0 : i32, i32, i32
  }
}

</mosaic_0001>

<llo_original>
// kernel: tpu_custom_call.1
$region0: #{tpu_custom_call.1}
  #allocation0 [shape = 'u32[]', space=smem, size = 0x4, offset = 0x4, fixed_abs, tag = 'smem constant byte address 0x4 - core index']
  #allocation1 [shape = 'u32[144,128]{1,0:T(1,128)}', space=vmem, size = 0x12000, scoped, tag = 'internal scratch']
  #allocation2 [shape = 'f32[64,32]{1,0:T(8,128)}', space=vmem, size = 0x8000, scoped, tag = 'scratch operand']
  #allocation3 [shape = 'f32[64,128]{1,0:T(8,128)}', space=vmem, size = 0x8000, scoped, tag = 'scratch operand']
  #allocation4 [shape = 's32[1]{0}', space=sflag, size = 0x4, scoped, tag = 'scratch operand']
  #allocation11 [shape = 's32[]', space=sflag, size = 0x4, offset = 0, fixed_abs, tag = 'sflag constant byte address 0x0 - dummy sync flag']
  %s0 = inlined_call_operand.vmem [shape: f32[64,32], index: 0, kind: input, shape index: {}]
  %s1 = inlined_call_operand.vmem [shape: f32[2,32,128], index: 1, kind: input, shape index: {}]
  %s2 = inlined_call_operand.hbm [shape: f32[2,32,128], index: 2, kind: input, shape index: {}]
  %s3 = inlined_call_operand.vmem [shape: f32[2,1,128], index: 3, kind: input, shape index: {}]
  %s4 = inlined_call_operand.hbm [shape: f32[2,8,32], index: 4, kind: output, shape index: {0}]
  %s5 = inlined_call_operand.hbm [shape: f32[2,8,32], index: 5, kind: output, shape index: {1}]
  %6 = xla_tuple %s4, %s5
  %s7 = sld [smem:[#allocation0]]
  $region95: #{tpu_custom_call.1} parent=0
    _
  %s9 = ssub.s32 1, %s7
  %s10 = scalar_select 0, %s9, %s7
  $region1: #{tpu_custom_call.1} parent=0
    #allocation5 [shape = 'u8[32768]{0}', space=vmem, size = 0x8000, scoped, tag = 'input window, operand 2']
    #allocation6 [shape = 's32[2]{0}', space=sflag, size = 0x8, scoped, tag = 'scoped memory for tpu_custom_call.1']
    #allocation7 [shape = 's32[2]{0}', space=sflag, size = 0x8, scoped, tag = 'scoped memory for tpu_custom_call.1']
    #allocation8 [shape = 'u8[8192]{0}', space=vmem, size = 0x2000, scoped, tag = 'output window, operand 0']
    #allocation9 [shape = 'u8[8192]{0}', space=vmem, size = 0x2000, scoped, tag = 'output window, operand 1']
    #allocation10 [shape = 's32[2]{0}', space=sflag, size = 0x8, scoped, tag = 'scoped memory for tpu_custom_call.1']
    %11 = vsyncpa [#allocation6], 0
    %s12 = scalar_lea.sflag [#allocation6], 1
    %13 = vsyncpa %s12, 0
    %14 = vsyncpa [#allocation7], 0
    %s15 = scalar_lea.sflag [#allocation7], 1
    %16 = vsyncpa %s15, 0
    %17 = vsyncpa [#allocation10], 0
    %s18 = scalar_lea.sflag [#allocation10], 1
    %19 = vsyncpa %s18, 0
    loop: start=0, step=1, limit=4
    $region2: #{tpu_custom_call.1} parent=1 // loop_pre_header
      _
    $region3: #{tpu_custom_call.1} parent=1 // loop_header
      %s21 = sphi 0, %s25
      %p22 = scmp.ge.s32.totalorder %s21, 4
      %s31 = sphi 0, %s33
      %s34 = sphi 0, %s31
      %s35 = sphi 0, %s34
      %s51 = sphi 0, %s35
      %s57 = sphi 0, %s59
      %s60 = sphi 0, %s57
      %s61 = sphi 0, %s60
      %s77 = sphi 0, %s61
      %s83 = sphi 0, %s85
      %s86 = sphi 0, %s83
      %s87 = sphi 0, %s86
      %s103 = sphi 0, %s87
      %s109 = sphi 0, %s111
      %s112 = sphi 0, %s109
      %s113 = sphi 0, %s112
      %s129 = sphi 0, %s113
      %s135 = sphi 0, %s137
      %s138 = sphi 0, %s135
      %s139 = sphi 0, %s138
      %s155 = sphi 0, %s139
    $region4: #{tpu_custom_call.1} parent=1 // loop_header_branch
      %24 = sbr.rel (%p22) target = $region8
    $region5: #{tpu_custom_call.1} parent=1 // loop_body
      %s26 = ssub.s32 %s21, 1
      %s27 = ssub.s32 %s21, 2
      %s28 = sadd.s32 %s21, 1
      %s29 = ssub.s32 %s21, %s28
      %p30 = scmp.eq.s32.totalorder %s29, 0
      %s32 = sadd.s32 %s31, 1
      %s33 = scalar_select %p30, %s31, %s32
      %p36 = pneg %p30
      %p37 = scmp.eq.s32.totalorder %s21, 1
      %p38 = por %p36, %p37
      %p39 = scmp.ne.s32.totalorder %s31, %s34
      %p40 = scmp.eq.s32.totalorder %s21, 0
      %p41 = por %p39, %p40
      %p42 = scmp.ne.s32.totalorder %s31, %s34
      %p43 = scmp.eq.s32.totalorder %s26, 1
      %p44 = por %p42, %p43
      %p45 = scmp.ne.s32.totalorder %s34, %s35
      %p46 = scmp.eq.s32.totalorder %s26, 0
      %p47 = por %p45, %p46
      %p48 = scmp.ne.s32.totalorder %s34, %s35
      %p49 = scmp.eq.s32.totalorder %s27, 1
      %p50 = por %p48, %p49
      %p52 = scmp.ne.s32.totalorder %s35, %s51
      %p53 = scmp.eq.s32.totalorder %s27, 0
      %p54 = por %p52, %p53
      %s55 = ssub.s32 %s21, %s28
      %p56 = scmp.eq.s32.totalorder %s55, 0
      %s58 = sadd.s32 %s57, 1
      %s59 = scalar_select %p56, %s57, %s58
      %p62 = pneg %p56
      %p63 = scmp.eq.s32.totalorder %s21, 1
      %p64 = por %p62, %p63
      %p65 = scmp.ne.s32.totalorder %s57, %s60
      %p66 = scmp.eq.s32.totalorder %s21, 0
      %p67 = por %p65, %p66
      %p68 = scmp.ne.s32.totalorder %s57, %s60
      %p69 = scmp.eq.s32.totalorder %s26, 1
      %p70 = por %p68, %p69
      %p71 = scmp.ne.s32.totalorder %s60, %s61
      %p72 = scmp.eq.s32.totalorder %s26, 0
      %p73 = por %p71, %p72
      %p74 = scmp.ne.s32.totalorder %s60, %s61
      %p75 = scmp.eq.s32.totalorder %s27, 1
      %p76 = por %p74, %p75
      %p78 = scmp.ne.s32.totalorder %s61, %s77
      %p79 = scmp.eq.s32.totalorder %s27, 0
      %p80 = por %p78, %p79
      %s81 = ssub.s32 %s21, %s28
      %p82 = scmp.eq.s32.totalorder %s81, 0
      %s84 = sadd.s32 %s83, 1
      %s85 = scalar_select %p82, %s83, %s84
      %p88 = pneg %p82
      %p89 = scmp.eq.s32.totalorder %s21, 1
      %p90 = por %p88, %p89
      %p91 = scmp.ne.s32.totalorder %s83, %s86
      %p92 = scmp.eq.s32.totalorder %s21, 0
      %p93 = por %p91, %p92
      %p94 = scmp.ne.s32.totalorder %s83, %s86
      %p95 = scmp.eq.s32.totalorder %s26, 1
      %p96 = por %p94, %p95
      %p97 = scmp.ne.s32.totalorder %s86, %s87
      %p98 = scmp.eq.s32.totalorder %s26, 0
      %p99 = por %p97, %p98
      %p100 = scmp.ne.s32.totalorder %s86, %s87
      %p101 = scmp.eq.s32.totalorder %s27, 1
      %p102 = por %p100, %p101
      %p104 = scmp.ne.s32.totalorder %s87, %s103
      %p105 = scmp.eq.s32.totalorder %s27, 0
      %p106 = por %p104, %p105
      %s107 = ssub.s32 %s21, %s28
      %p108 = scmp.eq.s32.totalorder %s107, 0
      %s110 = sadd.s32 %s109, 1
      %s111 = scalar_select %p108, %s109, %s110
      %p114 = pneg %p108
      %p115 = scmp.eq.s32.totalorder %s21, 1
      %p116 = por %p114, %p115
      %p117 = scmp.ne.s32.totalorder %s109, %s112
      %p118 = scmp.eq.s32.totalorder %s21, 0
      %p119 = por %p117, %p118
      %p120 = scmp.ne.s32.totalorder %s109, %s112
      %p121 = scmp.eq.s32.totalorder %s26, 1
      %p122 = por %p120, %p121
      %p123 = scmp.ne.s32.totalorder %s112, %s113
      %p124 = scmp.eq.s32.totalorder %s26, 0
      %p125 = por %p123, %p124
      %p126 = scmp.ne.s32.totalorder %s112, %s113
      %p127 = scmp.eq.s32.totalorder %s27, 1
      %p128 = por %p126, %p127
      %p130 = scmp.ne.s32.totalorder %s113, %s129
      %p131 = scmp.eq.s32.totalorder %s27, 0
      %p132 = por %p130, %p131
      %s133 = ssub.s32 %s21, %s28
      %p134 = scmp.eq.s32.totalorder %s133, 0
      %s136 = sadd.s32 %s135, 1
      %s137 = scalar_select %p134, %s135, %s136
      %p140 = pneg %p134
      %p141 = scmp.eq.s32.totalorder %s21, 1
      %p142 = por %p140, %p141
      %p143 = scmp.ne.s32.totalorder %s135, %s138
      %p144 = scmp.eq.s32.totalorder %s21, 0
      %p145 = por %p143, %p144
      %p146 = scmp.ne.s32.totalorder %s135, %s138
      %p147 = scmp.eq.s32.totalorder %s26, 1
      %p148 = por %p146, %p147
      %p149 = scmp.ne.s32.totalorder %s138, %s139
      %p150 = scmp.eq.s32.totalorder %s26, 0
      %p151 = por %p149, %p150
      %p152 = scmp.ne.s32.totalorder %s138, %s139
      %p153 = scmp.eq.s32.totalorder %s27, 1
      %p154 = por %p152, %p153
      %p156 = scmp.ne.s32.totalorder %s139, %s155
      %p157 = scmp.eq.s32.totalorder %s27, 0
      %p158 = por %p156, %p157
      %p159 = scmp.le.s32.totalorder 1, %s21
      %p160 = scmp.lt.s32.totalorder %s21, 3
      %p161 = pnand %p159, %p160
      %p162 = pneg %p161
      // Predicated region
      $region9: #{tpu_custom_call.1} parent=5 // pred_check
        _
      $region10: #{tpu_custom_call.1} parent=5 // pred_check_branch
        %164 = sbr.rel (%p161) target = $region12
      $region11: #{tpu_custom_call.1} parent=5 // pred_region
        %s165 = ssub.s32 %s21, 1
      $region12: #{tpu_custom_call.1} parent=5 // pred_fallthru
        _
      %p166 = scmp.lt.s32.totalorder %s21, 2
      // Predicated region
      $region13: #{tpu_custom_call.1} parent=5 // pred_check
        %p167 = pneg %p166
      $region14: #{tpu_custom_call.1} parent=5 // pred_check_branch
        %169 = sbr.rel (%p167) target = $region16
      $region15: #{tpu_custom_call.1} parent=5 // pred_region
        // Predicated region
        $region17: #{tpu_custom_call.1} parent=15 // pred_check
          %p170 = pneg %p41
        $region18: #{tpu_custom_call.1} parent=15 // pred_check_branch
          %172 = sbr.rel (%p170) target = $region20
        $region19: #{tpu_custom_call.1} parent=15 // pred_region
          %p173 = scmp.lt.s32.totalorder %s21, 1
          %s174 = scalar_select %p173, %s21, 1
          %s175 = smul.addr %s174, 4
          %s176 = smul.addr %s175, 8
          %s177 = scalar_lea.vmem %s1, %s176
        $region20: #{tpu_custom_call.1} parent=15 // pred_fallthru
          _
        // Predicated region
        $region21: #{tpu_custom_call.1} parent=15 // pred_check
          %p178 = pneg %p67
        $region22: #{tpu_custom_call.1} parent=15 // pred_check_branch
          %180 = sbr.rel (%p178) target = $region24
        $region23: #{tpu_custom_call.1} parent=15 // pred_region
          %s181 = sand.u32 %s57, 1
          %s182 = scalar_lea.sflag [#allocation6], %s181
          %s183 = sand.u32 %s57, 1
          %s184 = smul.addr %s183, 32
          %s185 = scalar_lea.vmem [#allocation5], %s184
          %s187 = ssub.s32 512, 512
          %188 = vsyncadd %s182, %s187
          %s189 = smul.addr %s21, 4
          %s190 = smul.addr %s189, 128
          %s191 = scalar_lea.hbm %s2, %s190
          %s192 = sshll.u32 %s185, 4
          %s193 = int_to_ptr.vmem [resolvable:$true] %s192
          %198 = dma.hbm_to_vmem [thread:$0]  %s191, 512, %s193, %s182, 128, 128, 8
        $region24: #{tpu_custom_call.1} parent=15 // pred_fallthru
          _
        // Predicated region
        $region25: #{tpu_custom_call.1} parent=15 // pred_check
          %p199 = pneg %p93
        $region26: #{tpu_custom_call.1} parent=15 // pred_check_branch
          %201 = sbr.rel (%p199) target = $region28
        $region27: #{tpu_custom_call.1} parent=15 // pred_region
          %p202 = scmp.lt.s32.totalorder %s21, 1
          %s203 = scalar_select %p202, %s21, 1
          %s204 = scalar_lea.vmem %s3, %s203
        $region28: #{tpu_custom_call.1} parent=15 // pred_fallthru
          _
      $region16: #{tpu_custom_call.1} parent=5 // pred_fallthru
        _
      %p205 = scmp.le.s32.totalorder 1, %s21
      %p206 = scmp.lt.s32.totalorder %s21, 3
      %p207 = pnand %p205, %p206
      %p208 = pneg %p207
      // Predicated region
      $region29: #{tpu_custom_call.1} parent=5 // pred_check
        _
      $region30: #{tpu_custom_call.1} parent=5 // pred_check_branch
        %210 = sbr.rel (%p207) target = $region32
      $region31: #{tpu_custom_call.1} parent=5 // pred_region
        %s211 = ssub.s32 %s21, 1
        %s212 = sand.u32 %s60, 1
        %s213 = scalar_lea.sflag [#allocation6], %s212
        %s214 = sand.u32 %s60, 1
        %s215 = smul.addr %s214, 32
        %s216 = scalar_lea.vmem [#allocation5], %s215
        // Predicated region
        $region33: #{tpu_custom_call.1} parent=31 // pred_check
          %p217 = pneg %p73
        $region34: #{tpu_custom_call.1} parent=31 // pred_check_branch
          %219 = sbr.rel (%p217) target = $region36
        $region35: #{tpu_custom_call.1} parent=31 // pred_region
          %220 = dma.done %s213, 512
        $region36: #{tpu_custom_call.1} parent=31 // pred_fallthru
          _
        %p221 = scmp.lt.s32.totalorder %s26, 1
        %s222 = scalar_select %p221, %s26, 1
        %s223 = smul.addr %s222, 4
        %s224 = smul.addr %s223, 8
        %s225 = scalar_lea.vmem %s1, %s224
        %p226 = pneg %p47
        %p227 = pneg %p44
        %s228 = sand.u32 %s60, 1
        %s229 = scalar_lea.sflag [#allocation6], %s228
        %s230 = sand.u32 %s60, 1
        %s231 = smul.addr %s230, 32
        %s232 = scalar_lea.vmem [#allocation5], %s231
        %p233 = pneg %p73
        %p234 = pneg %p70
        %p235 = scmp.lt.s32.totalorder %s26, 1
        %s236 = scalar_select %p235, %s26, 1
        %s237 = scalar_lea.vmem %s3, %s236
        %p238 = pneg %p99
        %p239 = pneg %p96
        %p240 = pneg %p125
        %p241 = pneg %p122
        %s242 = sand.u32 %s112, 1
        %s243 = scalar_lea.sflag [#allocation7], %s242
        %s244 = sand.u32 %s112, 1
        %s245 = smul.addr %s244, 8
        %s246 = scalar_lea.vmem [#allocation8], %s245
        %p247 = pneg %p151
        %p248 = pneg %p148
        %s249 = sand.u32 %s138, 1
        %s250 = scalar_lea.sflag [#allocation10], %s249
        %s251 = sand.u32 %s138, 1
        %s252 = smul.addr %s251, 8
        %s253 = scalar_lea.vmem [#allocation9], %s252
        %p254 = scmp.lt.s32.totalorder %s26, 1
        %s255 = scalar_select %p254, %s26, 1
        %s256 = smul.addr %s255, 4
        %s257 = smul.addr %s256, 8
        %s258 = scalar_lea.vmem %s1, %s257
        %p259 = scmp.lt.s32.totalorder %s26, 1
        %s260 = scalar_select %p259, %s26, 1
        %s261 = scalar_lea.vmem %s3, %s260
        %p262 = scmp.eq.s32.totalorder %s26, 0
        // Predicated region
        $region37: #{tpu_custom_call.1} parent=31 // pred_check
          %p263 = pneg %p262
        $region38: #{tpu_custom_call.1} parent=31 // pred_check_branch
          %265 = sbr.rel (%p263) target = $region40
        $region39: #{tpu_custom_call.1} parent=31 // pred_region
          %p267 = scmp.lt.u32.totalorder 64, 8
          %p268 = pneg %p267
          // Predicated region
          $region41: #{tpu_custom_call.1} parent=39 // pred_check
            _
          $region42: #{tpu_custom_call.1} parent=39 // pred_check_branch
            %270 = sbr.rel (%p267) target = $region44
          $region43: #{tpu_custom_call.1} parent=39 // pred_region
            %s286 = sand.u32 64, 7
            %p287 = scmp.eq.s32.totalorder %s286, 0
            // Predicated region
            $region56: #{tpu_custom_call.1} parent=43 // pred_check
              %p288 = pneg %p287
            $region57: #{tpu_custom_call.1} parent=43 // pred_check_branch
              %290 = sbr.rel (%p288) target = $region59
            $region58: #{tpu_custom_call.1} parent=43 // pred_region
              loop: start=0, step=1, limit=1
              $region60: #{tpu_custom_call.1} parent=58 // loop_pre_header
                _
              $region61: #{tpu_custom_call.1} parent=58 // loop_header
                %s292 = sphi 0, %s296
                %p293 = scmp.ge.s32.totalorder %s292, 1
                %s297 = sphi %s0, %s0
                %s298 = sphi [#allocation2], [#allocation2]
              $region62: #{tpu_custom_call.1} parent=58 // loop_header_branch
                %295 = sbr.rel (%p293) target = $region66
              $region63: #{tpu_custom_call.1} parent=58 // loop_body
                %v299 = vld [vmem:[%s297] sm:$0xff]
                %300 = vst [vmem:[%s298] sm:$0xff] %v299
                %v301 = vld [vmem:[%s297 + $0x8] sm:$0xff]
                %302 = vst [vmem:[%s298 + $0x8] sm:$0xff] %v301
                %v303 = vld [vmem:[%s297 + $0x10] sm:$0xff]
                %304 = vst [vmem:[%s298 + $0x10] sm:$0xff] %v303
                %v305 = vld [vmem:[%s297 + $0x18] sm:$0xff]
                %306 = vst [vmem:[%s298 + $0x18] sm:$0xff] %v305
                %v307 = vld [vmem:[%s297 + $0x20] sm:$0xff]
                %308 = vst [vmem:[%s298 + $0x20] sm:$0xff] %v307
                %v309 = vld [vmem:[%s297 + $0x28] sm:$0xff]
                %310 = vst [vmem:[%s298 + $0x28] sm:$0xff] %v309
                %v311 = vld [vmem:[%s297 + $0x30] sm:$0xff]
                %312 = vst [vmem:[%s298 + $0x30] sm:$0xff] %v311
                %v313 = vld [vmem:[%s297 + $0x38] sm:$0xff]
                %314 = vst [vmem:[%s298 + $0x38] sm:$0xff] %v313
              $region64: #{tpu_custom_call.1} parent=58 // loop_footer
                %s296 = sadd.s32 1, %s292
              $region65: #{tpu_custom_call.1} parent=58 // loop_footer_branch
                %291 = sbr.rel target = $region61
              $region66: #{tpu_custom_call.1} parent=58 // loop_exit
                _
            $region59: #{tpu_custom_call.1} parent=43 // pred_fallthru
              _
            %p315 = pneg %p287
            // Predicated region
            $region67: #{tpu_custom_call.1} parent=43 // pred_check
              _
            $region68: #{tpu_custom_call.1} parent=43 // pred_check_branch
              %317 = sbr.rel (%p287) target = $region70
            $region69: #{tpu_custom_call.1} parent=43 // pred_region
              %s318 = sand.u32 64, 7
            $region70: #{tpu_custom_call.1} parent=43 // pred_fallthru
              _
          $region44: #{tpu_custom_call.1} parent=39 // pred_fallthru
            _
          // Predicated region
          $region45: #{tpu_custom_call.1} parent=39 // pred_check
            %p271 = pneg %p267
          $region46: #{tpu_custom_call.1} parent=39 // pred_check_branch
            %273 = sbr.rel (%p271) target = $region48
          $region47: #{tpu_custom_call.1} parent=39 // pred_region
            %s274 = sshll.u32 1, 64
            %s275 = ssub.s32 %s274, 1
            loop: start=0, step=1, limit=1
            $region49: #{tpu_custom_call.1} parent=47 // loop_pre_header
              _
            $region50: #{tpu_custom_call.1} parent=47 // loop_header
              %s277 = sphi 0, %s281
              %p278 = scmp.ge.s32.totalorder %s277, 1
              %s282 = sphi %s0, %s0
              %s283 = sphi [#allocation2], [#allocation2]
            $region51: #{tpu_custom_call.1} parent=47 // loop_header_branch
              %280 = sbr.rel (%p278) target = $region55
            $region52: #{tpu_custom_call.1} parent=47 // loop_body
              %v284 = vld [vmem:[%s282] sm:%s275]
              %285 = vst [vmem:[%s283] sm:%s275] %v284
            $region53: #{tpu_custom_call.1} parent=47 // loop_footer
              %s281 = sadd.s32 1, %s277
            $region54: #{tpu_custom_call.1} parent=47 // loop_footer_branch
              %276 = sbr.rel target = $region50
            $region55: #{tpu_custom_call.1} parent=47 // loop_exit
              _
          $region48: #{tpu_custom_call.1} parent=39 // pred_fallthru
            _
          // Predicated region
          $region71: #{tpu_custom_call.1} parent=39 // pred_check
            _
          $region72: #{tpu_custom_call.1} parent=39 // pred_check_branch
            %321 = sbr.rel (0) target = $region74
          $region73: #{tpu_custom_call.1} parent=39 // pred_region
            %322 = vsyncadd [#allocation4], 1024
          $region74: #{tpu_custom_call.1} parent=39 // pred_fallthru
            _
          %s323 = smul.u32 64, 1
          %s324 = sshll.u32 %s323, 4
          %325 = dma.done [#allocation4], %s324
        $region40: #{tpu_custom_call.1} parent=31 // pred_fallthru
          _
        %v326 = vld [vmem:[#allocation2] sm:$0xff]
        %v327 = vld [vmem:[#allocation2 + $0x8] sm:$0xff]
        %v328 = vld [vmem:[#allocation2 + $0x10] sm:$0xff]
        %v329 = vld [vmem:[#allocation2 + $0x18] sm:$0xff]
        %v330 = vld [vmem:[#allocation2 + $0x20] sm:$0xff]
        %v331 = vld [vmem:[#allocation2 + $0x28] sm:$0xff]
        %v332 = vld [vmem:[#allocation2 + $0x30] sm:$0xff]
        %v333 = vld [vmem:[#allocation2 + $0x38] sm:$0xff]
        %v334 = vld [vmem:[%s258] sm:$0xff]
        %v335 = vld [vmem:[%s258 + $0x8] sm:$0xff]
        %v336 = vld [vmem:[%s258 + $0x10] sm:$0xff]
        %v337 = vld [vmem:[%s258 + $0x18] sm:$0xff]
        %v338 = vld [vmem:[%s261] sm:$0x1]
        %v340 = vlaneseq
        %v341 = vshrl.u32 %v340, 7
        %v342 = vsub.s32 0, %v341
        %v343 = vrot.slane %v338, %v342
        %vm345 = vcmask 261120
        %v347 = vsel %vm345, %v326, 0
        %v350 = vsel %vm345, %v327, 0
        %v353 = vsel %vm345, %v328, 0
        %v356 = vsel %vm345, %v329, 0
        %v359 = vsel %vm345, %v330, 0
        %v362 = vsel %vm345, %v331, 0
        %v365 = vsel %vm345, %v332, 0
        %v368 = vsel %vm345, %v333, 0
        %370 = vmatprep.subr.mxu0 0.0
        %371 = vmatpush1.msra.mxu0 0.0
        %372 = vmatprep.subr.mxu0 0.0
        %373 = vmatpush1.msra.mxu0 0.0
        %374 = vmatprep.subr.mxu0 0.0
        %375 = vmatpush1.msra.mxu0 0.0
        %376 = vmatprep.subr.mxu0 0.0
        %377 = vmatpush1.msra.mxu0 0.0
        %378 = vmatprep.subr.mxu0 0.0
        %379 = vmatpush1.msra.mxu0 0.0
        %380 = vmatprep.subr.mxu0 0.0
        %381 = vmatpush1.msra.mxu0 0.0
        %382 = vmatprep.subr.mxu0 0.0
        %383 = vmatpush1.msra.mxu0 0.0
        %384 = vmatprep.subr.mxu0 0.0
        %385 = vmatpush1.msra.mxu0 0.0
        %386 = vmatprep.subr.mxu0 0.0
        %387 = vmatpush1.msra.mxu0 0.0
        %388 = vmatprep.subr.mxu0 0.0
        %389 = vmatpush1.msra.mxu0 0.0
        %390 = vmatprep.subr.mxu0 0.0
        %391 = vmatpush1.msra.mxu0 0.0
        %392 = vmatprep.subr.mxu0 0.0
        %393 = vmatpush1.msra.mxu0 0.0
        %394 = vmatprep.subr.mxu0 0.0
        %395 = vmatpush1.msra.mxu0 %v337
        %396 = vmatprep.subr.mxu0 0.0
        %397 = vmatpush1.msra.mxu0 %v336
        %398 = vmatprep.subr.mxu0 0.0
        %399 = vmatpush1.msra.mxu0 %v335
        %400 = vmatprep.subr.mxu0 0.0
        %401 = vmatpush1.msra.mxu0 %v334
        %402 = vmatprep.subr.mxu0 0.0
        %403 = vmatpush2.msra.mxu0 0.0
        %404 = vmatprep.subr.mxu0 0.0
        %405 = vmatpush2.msra.mxu0 0.0
        %406 = vmatprep.subr.mxu0 0.0
        %407 = vmatpush2.msra.mxu0 0.0
        %408 = vmatprep.subr.mxu0 0.0
        %409 = vmatpush2.msra.mxu0 0.0
        %410 = vmatprep.subr.mxu0 0.0
        %411 = vmatpush2.msra.mxu0 0.0
        %412 = vmatprep.subr.mxu0 0.0
        %413 = vmatpush2.msra.mxu0 0.0
        %414 = vmatprep.subr.mxu0 0.0
        %415 = vmatpush2.msra.mxu0 0.0
        %416 = vmatprep.subr.mxu0 0.0
        %417 = vmatpush2.msra.mxu0 0.0
        %418 = vmatprep.subr.mxu0 0.0
        %419 = vmatpush2.msra.mxu0 0.0
        %420 = vmatprep.subr.mxu0 0.0
        %421 = vmatpush2.msra.mxu0 0.0
        %422 = vmatprep.subr.mxu0 0.0
        %423 = vmatpush2.msra.mxu0 0.0
        %424 = vmatprep.subr.mxu0 0.0
        %425 = vmatpush2.msra.mxu0 0.0
        %426 = vmatprep.subr.mxu0 0.0
        %427 = vmatpush2.msra.mxu0 0.0
        %428 = vmatprep.subr.mxu0 0.0
        %429 = vmatpush2.msra.mxu0 0.0
        %430 = vmatprep.subr.mxu0 0.0
        %431 = vmatpush2.msra.mxu0 0.0
        %432 = vmatprep.subr.mxu0 0.0
        %433 = vmatpush2.msra.mxu0 0.0
        %434 = vmatprep.mubr.f32.mxu0 0.0
        %435 = vmatmul.mubr.f32.gmra.mxu0 %v347
        %v436 = vpop.f32.mrf.mxu0
        %v437 = vadd.f32 %v343, %v436
        %v438 = vpop.f32.mrf.mxu0
        %439 = vmatprep.mubr.f32.mxu0 0.0
        %440 = vmatmul.mubr.f32.gmra.mxu0 %v350
        %v441 = vpop.f32.mrf.mxu0
        %v442 = vadd.f32 %v343, %v441
        %v443 = vpop.f32.mrf.mxu0
        %444 = vmatprep.mubr.f32.mxu0 0.0
        %445 = vmatmul.mubr.f32.gmra.mxu0 %v353
        %v446 = vpop.f32.mrf.mxu0
        %v447 = vadd.f32 %v343, %v446
        %v448 = vpop.f32.mrf.mxu0
        %449 = vmatprep.mubr.f32.mxu0 0.0
        %450 = vmatmul.mubr.f32.gmra.mxu0 %v356
        %v451 = vpop.f32.mrf.mxu0
        %v452 = vadd.f32 %v343, %v451
        %v453 = vpop.f32.mrf.mxu0
        %454 = vmatprep.mubr.f32.mxu0 0.0
        %455 = vmatmul.mubr.f32.gmra.mxu0 %v359
        %v456 = vpop.f32.mrf.mxu0
        %v457 = vadd.f32 %v343, %v456
        %v458 = vpop.f32.mrf.mxu0
        %459 = vmatprep.mubr.f32.mxu0 0.0
        %460 = vmatmul.mubr.f32.gmra.mxu0 %v362
        %v461 = vpop.f32.mrf.mxu0
        %v462 = vadd.f32 %v343, %v461
        %v463 = vpop.f32.mrf.mxu0
        %464 = vmatprep.mubr.f32.mxu0 0.0
        %465 = vmatmul.mubr.f32.gmra.mxu0 %v365
        %v466 = vpop.f32.mrf.mxu0
        %v467 = vadd.f32 %v343, %v466
        %v468 = vpop.f32.mrf.mxu0
        %469 = vmatprep.mubr.f32.mxu0 0.0
        %470 = vmatmul.mubr.f32.gmra.mxu0 %v368
        %v471 = vpop.f32.mrf.mxu0
        %v472 = vadd.f32 %v343, %v471
        %v473 = vpop.f32.mrf.mxu0
        %474 = vdwg.mxu0
        %475 = vst [vmem:[#allocation3] sm:$0xff] %v437
        %476 = vst [vmem:[#allocation3 + $0x8] sm:$0xff] %v442
        %477 = vst [vmem:[#allocation3 + $0x10] sm:$0xff] %v447
        %478 = vst [vmem:[#allocation3 + $0x18] sm:$0xff] %v452
        %479 = vst [vmem:[#allocation3 + $0x20] sm:$0xff] %v457
        %480 = vst [vmem:[#allocation3 + $0x28] sm:$0xff] %v462
        %481 = vst [vmem:[#allocation3 + $0x30] sm:$0xff] %v467
        %482 = vst [vmem:[#allocation3 + $0x38] sm:$0xff] %v472
        %v483 = vld [vmem:[%s216] sm:$0xff]
        %v484 = vld [vmem:[%s216 + $0x8] sm:$0xff]
        %v485 = vld [vmem:[%s216 + $0x10] sm:$0xff]
        %v486 = vld [vmem:[%s216 + $0x18] sm:$0xff]
        %v487 = vld [vmem:[#allocation3] sm:$0xff]
        %v489 = vsel %vm345, 0.0, 0
        %491 = vmatprep.subr.mxu0 0.0
        %492 = vmatpush1.msra.mxu0 0.0
        %493 = vmatprep.subr.mxu0 0.0
        %494 = vmatpush1.msra.mxu0 0.0
        %495 = vmatprep.subr.mxu0 0.0
        %496 = vmatpush1.msra.mxu0 0.0
        %497 = vmatprep.subr.mxu0 0.0
        %498 = vmatpush1.msra.mxu0 0.0
        %499 = vmatprep.subr.mxu0 0.0
        %500 = vmatpush1.msra.mxu0 0.0
        %501 = vmatprep.subr.mxu0 0.0
        %502 = vmatpush1.msra.mxu0 0.0
        %503 = vmatprep.subr.mxu0 0.0
        %504 = vmatpush1.msra.mxu0 0.0
        %505 = vmatprep.subr.mxu0 0.0
        %506 = vmatpush1.msra.mxu0 0.0
        %507 = vmatprep.subr.mxu0 0.0
        %508 = vmatpush1.msra.mxu0 0.0
        %509 = vmatprep.subr.mxu0 0.0
        %510 = vmatpush1.msra.mxu0 0.0
        %511 = vmatprep.subr.mxu0 0.0
        %512 = vmatpush1.msra.mxu0 0.0
        %513 = vmatprep.subr.mxu0 0.0
        %514 = vmatpush1.msra.mxu0 0.0
        %515 = vmatprep.subr.mxu0 0.0
        %516 = vmatpush1.msra.mxu0 %v486
        %517 = vmatprep.subr.mxu0 0.0
        %518 = vmatpush1.msra.mxu0 %v485
        %519 = vmatprep.subr.mxu0 0.0
        %520 = vmatpush1.msra.mxu0 %v484
        %521 = vmatprep.subr.mxu0 0.0
        %522 = vmatpush1.msra.mxu0 %v483
        %523 = vmatprep.subr.mxu0 0.0
        %524 = vmatpush2.msra.mxu0 0.0
        %525 = vmatprep.subr.mxu0 0.0
        %526 = vmatpush2.msra.mxu0 0.0
        %527 = vmatprep.subr.mxu0 0.0
        %528 = vmatpush2.msra.mxu0 0.0
        %529 = vmatprep.subr.mxu0 0.0
        %530 = vmatpush2.msra.mxu0 0.0
        %531 = vmatprep.subr.mxu0 0.0
        %532 = vmatpush2.msra.mxu0 0.0
        %533 = vmatprep.subr.mxu0 0.0
        %534 = vmatpush2.msra.mxu0 0.0
        %535 = vmatprep.subr.mxu0 0.0
        %536 = vmatpush2.msra.mxu0 0.0
        %537 = vmatprep.subr.mxu0 0.0
        %538 = vmatpush2.msra.mxu0 0.0
        %539 = vmatprep.subr.mxu0 0.0
        %540 = vmatpush2.msra.mxu0 0.0
        %541 = vmatprep.subr.mxu0 0.0
        %542 = vmatpush2.msra.mxu0 0.0
        %543 = vmatprep.subr.mxu0 0.0
        %544 = vmatpush2.msra.mxu0 0.0
        %545 = vmatprep.subr.mxu0 0.0
        %546 = vmatpush2.msra.mxu0 0.0
        %547 = vmatprep.subr.mxu0 0.0
        %548 = vmatpush2.msra.mxu0 0.0
        %549 = vmatprep.subr.mxu0 0.0
        %550 = vmatpush2.msra.mxu0 0.0
        %551 = vmatprep.subr.mxu0 0.0
        %552 = vmatpush2.msra.mxu0 0.0
        %553 = vmatprep.subr.mxu0 0.0
        %554 = vmatpush2.msra.mxu0 0.0
        %555 = vmatprep.mubr.f32.mxu0 0.0
        %556 = vmatmul.mubr.f32.gmra.mxu0 %v489
        %v557 = vpop.f32.mrf.mxu0
        %v558 = vadd.f32 0.0, %v557
        %v559 = vpop.f32.mrf.mxu0
        %560 = vdwg.mxu0
        %v561 = vadd.f32 %v487, %v558
        %v562 = vxor.u32 %v561, 2147483648
        %v563 = vmul.f32 %v562, 1.442695
        %v564 = vpow.pop %v563
        %v565 = vadd.f32 %v564, 1.0
        %v566 = vrcp.pop %v565
        %v567 = vmul.f32 1.0, %v566
        %v568 = vtanh.pop %v561
        %v569 = vmul.f32 %v567, 0.0
        %571 = vrot.lane.b32.xlu0 %v568, 64
        %v572 = vpop.permute.xlu0 %571
        %v574 = vmul.f32 %v567, %v572
        %576 = vrot.lane.b32.xlu0 %v574, 32
        %v577 = vpop.permute.xlu0 %576
        %v579 = vadd.f32 %v569, %v577
        %v580 = vtanh.pop %v579
        %582 = vrot.lane.b32.xlu0 %v580, 64
        %v583 = vpop.permute.xlu0 %582
        %v585 = vmul.f32 %v567, %v583
        %587 = vrot.lane.b32.xlu0 %v585, 32
        %v588 = vpop.permute.xlu0 %587
        %590 = vst.msk [vmem:[#allocation2] sm:$0xff] %vm345, %v588
        %s591 = scalar_lea.vmem [#allocation3], 8
        %v592 = vld [vmem:[%s591] sm:$0xff]
        %v593 = vsel %vm345, %v588, 0
        %595 = vmatprep.subr.mxu0 0.0
        %596 = vmatpush1.msra.mxu0 0.0
        %597 = vmatprep.subr.mxu0 0.0
        %598 = vmatpush1.msra.mxu0 0.0
        %599 = vmatprep.subr.mxu0 0.0
        %600 = vmatpush1.msra.mxu0 0.0
        %601 = vmatprep.subr.mxu0 0.0
        %602 = vmatpush1.msra.mxu0 0.0
        %603 = vmatprep.subr.mxu0 0.0
        %604 = vmatpush1.msra.mxu0 0.0
        %605 = vmatprep.subr.mxu0 0.0
        %606 = vmatpush1.msra.mxu0 0.0
        %607 = vmatprep.subr.mxu0 0.0
        %608 = vmatpush1.msra.mxu0 0.0
        %609 = vmatprep.subr.mxu0 0.0
        %610 = vmatpush1.msra.mxu0 0.0
        %611 = vmatprep.subr.mxu0 0.0
        %612 = vmatpush1.msra.mxu0 0.0
        %613 = vmatprep.subr.mxu0 0.0
        %614 = vmatpush1.msra.mxu0 0.0
        %615 = vmatprep.subr.mxu0 0.0
        %616 = vmatpush1.msra.mxu0 0.0
        %617 = vmatprep.subr.mxu0 0.0
        %618 = vmatpush1.msra.mxu0 0.0
        %619 = vmatprep.subr.mxu0 0.0
        %620 = vmatpush1.msra.mxu0 %v486
        %621 = vmatprep.subr.mxu0 0.0
        %622 = vmatpush1.msra.mxu0 %v485
        %623 = vmatprep.subr.mxu0 0.0
        %624 = vmatpush1.msra.mxu0 %v484
        %625 = vmatprep.subr.mxu0 0.0
        %626 = vmatpush1.msra.mxu0 %v483
        %627 = vmatprep.subr.mxu0 0.0
        %628 = vmatpush2.msra.mxu0 0.0
        %629 = vmatprep.subr.mxu0 0.0
        %630 = vmatpush2.msra.mxu0 0.0
        %631 = vmatprep.subr.mxu0 0.0
        %632 = vmatpush2.msra.mxu0 0.0
        %633 = vmatprep.subr.mxu0 0.0
        %634 = vmatpush2.msra.mxu0 0.0
        %635 = vmatprep.subr.mxu0 0.0
        %636 = vmatpush2.msra.mxu0 0.0
        %637 = vmatprep.subr.mxu0 0.0
        %638 = vmatpush2.msra.mxu0 0.0
        %639 = vmatprep.subr.mxu0 0.0
        %640 = vmatpush2.msra.mxu0 0.0
        %641 = vmatprep.subr.mxu0 0.0
        %642 = vmatpush2.msra.mxu0 0.0
        %643 = vmatprep.subr.mxu0 0.0
        %644 = vmatpush2.msra.mxu0 0.0
        %645 = vmatprep.subr.mxu0 0.0
        %646 = vmatpush2.msra.mxu0 0.0
        %647 = vmatprep.subr.mxu0 0.0
        %648 = vmatpush2.msra.mxu0 0.0
        %649 = vmatprep.subr.mxu0 0.0
        %650 = vmatpush2.msra.mxu0 0.0
        %651 = vmatprep.subr.mxu0 0.0
        %652 = vmatpush2.msra.mxu0 0.0
        %653 = vmatprep.subr.mxu0 0.0
        %654 = vmatpush2.msra.mxu0 0.0
        %655 = vmatprep.subr.mxu0 0.0
        %656 = vmatpush2.msra.mxu0 0.0
        %657 = vmatprep.subr.mxu0 0.0
        %658 = vmatpush2.msra.mxu0 0.0
        %659 = vmatprep.mubr.f32.mxu0 0.0
        %660 = vmatmul.mubr.f32.gmra.mxu0 %v593
        %v661 = vpop.f32.mrf.mxu0
        %v662 = vadd.f32 0.0, %v661
        %v663 = vpop.f32.mrf.mxu0
        %664 = vdwg.mxu0
        %v665 = vadd.f32 %v592, %v662
        %v666 = vxor.u32 %v665, 2147483648
        %v667 = vmul.f32 %v666, 1.442695
        %v668 = vpow.pop %v667
        %v669 = vadd.f32 %v668, 1.0
        %v670 = vrcp.pop %v669
        %v671 = vmul.f32 1.0, %v670
        %v672 = vtanh.pop %v665
        %v673 = vmul.f32 %v671, %v579
        %675 = vrot.lane.b32.xlu0 %v672, 64
        %v676 = vpop.permute.xlu0 %675
        %v678 = vmul.f32 %v671, %v676
        %680 = vrot.lane.b32.xlu0 %v678, 32
        %v681 = vpop.permute.xlu0 %680
        %v683 = vadd.f32 %v673, %v681
        %v684 = vtanh.pop %v683
        %686 = vrot.lane.b32.xlu0 %v684, 64
        %v687 = vpop.permute.xlu0 %686
        %v689 = vmul.f32 %v671, %v687
        %691 = vrot.lane.b32.xlu0 %v689, 32
        %v692 = vpop.permute.xlu0 %691
        %s694 = scalar_lea.vmem [#allocation2], 8
        %695 = vst.msk [vmem:[%s694] sm:$0xff] %vm345, %v692
        %s696 = scalar_lea.vmem [#allocation3], 16
        %v697 = vld [vmem:[%s696] sm:$0xff]
        %v698 = vsel %vm345, %v692, 0
        %700 = vmatprep.subr.mxu0 0.0
        %701 = vmatpush1.msra.mxu0 0.0
        %702 = vmatprep.subr.mxu0 0.0
        %703 = vmatpush1.msra.mxu0 0.0
        %704 = vmatprep.subr.mxu0 0.0
        %705 = vmatpush1.msra.mxu0 0.0
        %706 = vmatprep.subr.mxu0 0.0
        %707 = vmatpush1.msra.mxu0 0.0
        %708 = vmatprep.subr.mxu0 0.0
        %709 = vmatpush1.msra.mxu0 0.0
        %710 = vmatprep.subr.mxu0 0.0
        %711 = vmatpush1.msra.mxu0 0.0
        %712 = vmatprep.subr.mxu0 0.0
        %713 = vmatpush1.msra.mxu0 0.0
        %714 = vmatprep.subr.mxu0 0.0
        %715 = vmatpush1.msra.mxu0 0.0
        %716 = vmatprep.subr.mxu0 0.0
        %717 = vmatpush1.msra.mxu0 0.0
        %718 = vmatprep.subr.mxu0 0.0
        %719 = vmatpush1.msra.mxu0 0.0
        %720 = vmatprep.subr.mxu0 0.0
        %721 = vmatpush1.msra.mxu0 0.0
        %722 = vmatprep.subr.mxu0 0.0
        %723 = vmatpush1.msra.mxu0 0.0
        %724 = vmatprep.subr.mxu0 0.0
        %725 = vmatpush1.msra.mxu0 %v486
        %726 = vmatprep.subr.mxu0 0.0
        %727 = vmatpush1.msra.mxu0 %v485
        %728 = vmatprep.subr.mxu0 0.0
        %729 = vmatpush1.msra.mxu0 %v484
        %730 = vmatprep.subr.mxu0 0.0
        %731 = vmatpush1.msra.mxu0 %v483
        %732 = vmatprep.subr.mxu0 0.0
        %733 = vmatpush2.msra.mxu0 0.0
        %734 = vmatprep.subr.mxu0 0.0
        %735 = vmatpush2.msra.mxu0 0.0
        %736 = vmatprep.subr.mxu0 0.0
        %737 = vmatpush2.msra.mxu0 0.0
        %738 = vmatprep.subr.mxu0 0.0
        %739 = vmatpush2.msra.mxu0 0.0
        %740 = vmatprep.subr.mxu0 0.0
        %741 = vmatpush2.msra.mxu0 0.0
        %742 = vmatprep.subr.mxu0 0.0
        %743 = vmatpush2.msra.mxu0 0.0
        %744 = vmatprep.subr.mxu0 0.0
        %745 = vmatpush2.msra.mxu0 0.0
        %746 = vmatprep.subr.mxu0 0.0
        %747 = vmatpush2.msra.mxu0 0.0
        %748 = vmatprep.subr.mxu0 0.0
        %749 = vmatpush2.msra.mxu0 0.0
        %750 = vmatprep.subr.mxu0 0.0
        %751 = vmatpush2.msra.mxu0 0.0
        %752 = vmatprep.subr.mxu0 0.0
        %753 = vmatpush2.msra.mxu0 0.0
        %754 = vmatprep.subr.mxu0 0.0
        %755 = vmatpush2.msra.mxu0 0.0
        %756 = vmatprep.subr.mxu0 0.0
        %757 = vmatpush2.msra.mxu0 0.0
        %758 = vmatprep.subr.mxu0 0.0
        %759 = vmatpush2.msra.mxu0 0.0
        %760 = vmatprep.subr.mxu0 0.0
        %761 = vmatpush2.msra.mxu0 0.0
        %762 = vmatprep.subr.mxu0 0.0
        %763 = vmatpush2.msra.mxu0 0.0
        %764 = vmatprep.mubr.f32.mxu0 0.0
        %765 = vmatmul.mubr.f32.gmra.mxu0 %v698
        %v766 = vpop.f32.mrf.mxu0
        %v767 = vadd.f32 0.0, %v766
        %v768 = vpop.f32.mrf.mxu0
        %769 = vdwg.mxu0
        %v770 = vadd.f32 %v697, %v767
        %v771 = vxor.u32 %v770, 2147483648
        %v772 = vmul.f32 %v771, 1.442695
        %v773 = vpow.pop %v772
        %v774 = vadd.f32 %v773, 1.0
        %v775 = vrcp.pop %v774
        %v776 = vmul.f32 1.0, %v775
        %v777 = vtanh.pop %v770
        %v778 = vmul.f32 %v776, %v683
        %780 = vrot.lane.b32.xlu0 %v777, 64
        %v781 = vpop.permute.xlu0 %780
        %v783 = vmul.f32 %v776, %v781
        %785 = vrot.lane.b32.xlu0 %v783, 32
        %v786 = vpop.permute.xlu0 %785
        %v788 = vadd.f32 %v778, %v786
        %v789 = vtanh.pop %v788
        %791 = vrot.lane.b32.xlu0 %v789, 64
        %v792 = vpop.permute.xlu0 %791
        %v794 = vmul.f32 %v776, %v792
        %796 = vrot.lane.b32.xlu0 %v794, 32
        %v797 = vpop.permute.xlu0 %796
        %s799 = scalar_lea.vmem [#allocation2], 16
        %800 = vst.msk [vmem:[%s799] sm:$0xff] %vm345, %v797
        %s801 = scalar_lea.vmem [#allocation3], 24
        %v802 = vld [vmem:[%s801] sm:$0xff]
        %v803 = vsel %vm345, %v797, 0
        %805 = vmatprep.subr.mxu0 0.0
        %806 = vmatpush1.msra.mxu0 0.0
        %807 = vmatprep.subr.mxu0 0.0
        %808 = vmatpush1.msra.mxu0 0.0
        %809 = vmatprep.subr.mxu0 0.0
        %810 = vmatpush1.msra.mxu0 0.0
        %811 = vmatprep.subr.mxu0 0.0
        %812 = vmatpush1.msra.mxu0 0.0
        %813 = vmatprep.subr.mxu0 0.0
        %814 = vmatpush1.msra.mxu0 0.0
        %815 = vmatprep.subr.mxu0 0.0
        %816 = vmatpush1.msra.mxu0 0.0
        %817 = vmatprep.subr.mxu0 0.0
        %818 = vmatpush1.msra.mxu0 0.0
        %819 = vmatprep.subr.mxu0 0.0
        %820 = vmatpush1.msra.mxu0 0.0
        %821 = vmatprep.subr.mxu0 0.0
        %822 = vmatpush1.msra.mxu0 0.0
        %823 = vmatprep.subr.mxu0 0.0
        %824 = vmatpush1.msra.mxu0 0.0
        %825 = vmatprep.subr.mxu0 0.0
        %826 = vmatpush1.msra.mxu0 0.0
        %827 = vmatprep.subr.mxu0 0.0
        %828 = vmatpush1.msra.mxu0 0.0
        %829 = vmatprep.subr.mxu0 0.0
        %830 = vmatpush1.msra.mxu0 %v486
        %831 = vmatprep.subr.mxu0 0.0
        %832 = vmatpush1.msra.mxu0 %v485
        %833 = vmatprep.subr.mxu0 0.0
        %834 = vmatpush1.msra.mxu0 %v484
        %835 = vmatprep.subr.mxu0 0.0
        %836 = vmatpush1.msra.mxu0 %v483
        %837 = vmatprep.subr.mxu0 0.0
        %838 = vmatpush2.msra.mxu0 0.0
        %839 = vmatprep.subr.mxu0 0.0
        %840 = vmatpush2.msra.mxu0 0.0
        %841 = vmatprep.subr.mxu0 0.0
        %842 = vmatpush2.msra.mxu0 0.0
        %843 = vmatprep.subr.mxu0 0.0
        %844 = vmatpush2.msra.mxu0 0.0
        %845 = vmatprep.subr.mxu0 0.0
        %846 = vmatpush2.msra.mxu0 0.0
        %847 = vmatprep.subr.mxu0 0.0
        %848 = vmatpush2.msra.mxu0 0.0
        %849 = vmatprep.subr.mxu0 0.0
        %850 = vmatpush2.msra.mxu0 0.0
        %851 = vmatprep.subr.mxu0 0.0
        %852 = vmatpush2.msra.mxu0 0.0
        %853 = vmatprep.subr.mxu0 0.0
        %854 = vmatpush2.msra.mxu0 0.0
        %855 = vmatprep.subr.mxu0 0.0
        %856 = vmatpush2.msra.mxu0 0.0
        %857 = vmatprep.subr.mxu0 0.0
        %858 = vmatpush2.msra.mxu0 0.0
        %859 = vmatprep.subr.mxu0 0.0
        %860 = vmatpush2.msra.mxu0 0.0
        %861 = vmatprep.subr.mxu0 0.0
        %862 = vmatpush2.msra.mxu0 0.0
        %863 = vmatprep.subr.mxu0 0.0
        %864 = vmatpush2.msra.mxu0 0.0
        %865 = vmatprep.subr.mxu0 0.0
        %866 = vmatpush2.msra.mxu0 0.0
        %867 = vmatprep.subr.mxu0 0.0
        %868 = vmatpush2.msra.mxu0 0.0
        %869 = vmatprep.mubr.f32.mxu0 0.0
        %870 = vmatmul.mubr.f32.gmra.mxu0 %v803
        %v871 = vpop.f32.mrf.mxu0
        %v872 = vadd.f32 0.0, %v871
        %v873 = vpop.f32.mrf.mxu0
        %874 = vdwg.mxu0
        %v875 = vadd.f32 %v802, %v872
        %v876 = vxor.u32 %v875, 2147483648
        %v877 = vmul.f32 %v876, 1.442695
        %v878 = vpow.pop %v877
        %v879 = vadd.f32 %v878, 1.0
        %v880 = vrcp.pop %v879
        %v881 = vmul.f32 1.0, %v880
        %v882 = vtanh.pop %v875
        %v883 = vmul.f32 %v881, %v788
        %885 = vrot.lane.b32.xlu0 %v882, 64
        %v886 = vpop.permute.xlu0 %885
        %v888 = vmul.f32 %v881, %v886
        %890 = vrot.lane.b32.xlu0 %v888, 32
        %v891 = vpop.permute.xlu0 %890
        %v893 = vadd.f32 %v883, %v891
        %v894 = vtanh.pop %v893
        %896 = vrot.lane.b32.xlu0 %v894, 64
        %v897 = vpop.permute.xlu0 %896
        %v899 = vmul.f32 %v881, %v897
        %901 = vrot.lane.b32.xlu0 %v899, 32
        %v902 = vpop.permute.xlu0 %901
        %s904 = scalar_lea.vmem [#allocation2], 24
        %905 = vst.msk [vmem:[%s904] sm:$0xff] %vm345, %v902
        %s906 = scalar_lea.vmem [#allocation3], 32
        %v907 = vld [vmem:[%s906] sm:$0xff]
        %v908 = vsel %vm345, %v902, 0
        %910 = vmatprep.subr.mxu0 0.0
        %911 = vmatpush1.msra.mxu0 0.0
        %912 = vmatprep.subr.mxu0 0.0
        %913 = vmatpush1.msra.mxu0 0.0
        %914 = vmatprep.subr.mxu0 0.0
        %915 = vmatpush1.msra.mxu0 0.0
        %916 = vmatprep.subr.mxu0 0.0
        %917 = vmatpush1.msra.mxu0 0.0
        %918 = vmatprep.subr.mxu0 0.0
        %919 = vmatpush1.msra.mxu0 0.0
        %920 = vmatprep.subr.mxu0 0.0
        %921 = vmatpush1.msra.mxu0 0.0
        %922 = vmatprep.subr.mxu0 0.0
        %923 = vmatpush1.msra.mxu0 0.0
        %924 = vmatprep.subr.mxu0 0.0
        %925 = vmatpush1.msra.mxu0 0.0
        %926 = vmatprep.subr.mxu0 0.0
        %927 = vmatpush1.msra.mxu0 0.0
        %928 = vmatprep.subr.mxu0 0.0
        %929 = vmatpush1.msra.mxu0 0.0
        %930 = vmatprep.subr.mxu0 0.0
        %931 = vmatpush1.msra.mxu0 0.0
        %932 = vmatprep.subr.mxu0 0.0
        %933 = vmatpush1.msra.mxu0 0.0
        %934 = vmatprep.subr.mxu0 0.0
        %935 = vmatpush1.msra.mxu0 %v486
        %936 = vmatprep.subr.mxu0 0.0
        %937 = vmatpush1.msra.mxu0 %v485
        %938 = vmatprep.subr.mxu0 0.0
        %939 = vmatpush1.msra.mxu0 %v484
        %940 = vmatprep.subr.mxu0 0.0
        %941 = vmatpush1.msra.mxu0 %v483
        %942 = vmatprep.subr.mxu0 0.0
        %943 = vmatpush2.msra.mxu0 0.0
        %944 = vmatprep.subr.mxu0 0.0
        %945 = vmatpush2.msra.mxu0 0.0
        %946 = vmatprep.subr.mxu0 0.0
        %947 = vmatpush2.msra.mxu0 0.0
        %948 = vmatprep.subr.mxu0 0.0
        %949 = vmatpush2.msra.mxu0 0.0
        %950 = vmatprep.subr.mxu0 0.0
        %951 = vmatpush2.msra.mxu0 0.0
        %952 = vmatprep.subr.mxu0 0.0
        %953 = vmatpush2.msra.mxu0 0.0
        %954 = vmatprep.subr.mxu0 0.0
        %955 = vmatpush2.msra.mxu0 0.0
        %956 = vmatprep.subr.mxu0 0.0
        %957 = vmatpush2.msra.mxu0 0.0
        %958 = vmatprep.subr.mxu0 0.0
        %959 = vmatpush2.msra.mxu0 0.0
        %960 = vmatprep.subr.mxu0 0.0
        %961 = vmatpush2.msra.mxu0 0.0
        %962 = vmatprep.subr.mxu0 0.0
        %963 = vmatpush2.msra.mxu0 0.0
        %964 = vmatprep.subr.mxu0 0.0
        %965 = vmatpush2.msra.mxu0 0.0
        %966 = vmatprep.subr.mxu0 0.0
        %967 = vmatpush2.msra.mxu0 0.0
        %968 = vmatprep.subr.mxu0 0.0
        %969 = vmatpush2.msra.mxu0 0.0
        %970 = vmatprep.subr.mxu0 0.0
        %971 = vmatpush2.msra.mxu0 0.0
        %972 = vmatprep.subr.mxu0 0.0
        %973 = vmatpush2.msra.mxu0 0.0
        %974 = vmatprep.mubr.f32.mxu0 0.0
        %975 = vmatmul.mubr.f32.gmra.mxu0 %v908
        %v976 = vpop.f32.mrf.mxu0
        %v977 = vadd.f32 0.0, %v976
        %v978 = vpop.f32.mrf.mxu0
        %979 = vdwg.mxu0
        %v980 = vadd.f32 %v907, %v977
        %v981 = vxor.u32 %v980, 2147483648
        %v982 = vmul.f32 %v981, 1.442695
        %v983 = vpow.pop %v982
        %v984 = vadd.f32 %v983, 1.0
        %v985 = vrcp.pop %v984
        %v986 = vmul.f32 1.0, %v985
        %v987 = vtanh.pop %v980
        %v988 = vmul.f32 %v986, %v893
        %990 = vrot.lane.b32.xlu0 %v987, 64
        %v991 = vpop.permute.xlu0 %990
        %v993 = vmul.f32 %v986, %v991
        %995 = vrot.lane.b32.xlu0 %v993, 32
        %v996 = vpop.permute.xlu0 %995
        %v998 = vadd.f32 %v988, %v996
        %v999 = vtanh.pop %v998
        %1001 = vrot.lane.b32.xlu0 %v999, 64
        %v1002 = vpop.permute.xlu0 %1001
        %v1004 = vmul.f32 %v986, %v1002
        %1006 = vrot.lane.b32.xlu0 %v1004, 32
        %v1007 = vpop.permute.xlu0 %1006
        %s1009 = scalar_lea.vmem [#allocation2], 32
        %1010 = vst.msk [vmem:[%s1009] sm:$0xff] %vm345, %v1007
        %s1011 = scalar_lea.vmem [#allocation3], 40
        %v1012 = vld [vmem:[%s1011] sm:$0xff]
        %v1013 = vsel %vm345, %v1007, 0
        %1015 = vmatprep.subr.mxu0 0.0
        %1016 = vmatpush1.msra.mxu0 0.0
        %1017 = vmatprep.subr.mxu0 0.0
        %1018 = vmatpush1.msra.mxu0 0.0
        %1019 = vmatprep.subr.mxu0 0.0
        %1020 = vmatpush1.msra.mxu0 0.0
        %1021 = vmatprep.subr.mxu0 0.0
        %1022 = vmatpush1.msra.mxu0 0.0
        %1023 = vmatprep.subr.mxu0 0.0
        %1024 = vmatpush1.msra.mxu0 0.0
        %1025 = vmatprep.subr.mxu0 0.0
        %1026 = vmatpush1.msra.mxu0 0.0
        %1027 = vmatprep.subr.mxu0 0.0
        %1028 = vmatpush1.msra.mxu0 0.0
        %1029 = vmatprep.subr.mxu0 0.0
        %1030 = vmatpush1.msra.mxu0 0.0
        %1031 = vmatprep.subr.mxu0 0.0
        %1032 = vmatpush1.msra.mxu0 0.0
        %1033 = vmatprep.subr.mxu0 0.0
        %1034 = vmatpush1.msra.mxu0 0.0
        %1035 = vmatprep.subr.mxu0 0.0
        %1036 = vmatpush1.msra.mxu0 0.0
        %1037 = vmatprep.subr.mxu0 0.0
        %1038 = vmatpush1.msra.mxu0 0.0
        %1039 = vmatprep.subr.mxu0 0.0
        %1040 = vmatpush1.msra.mxu0 %v486
        %1041 = vmatprep.subr.mxu0 0.0
        %1042 = vmatpush1.msra.mxu0 %v485
        %1043 = vmatprep.subr.mxu0 0.0
        %1044 = vmatpush1.msra.mxu0 %v484
        %1045 = vmatprep.subr.mxu0 0.0
        %1046 = vmatpush1.msra.mxu0 %v483
        %1047 = vmatprep.subr.mxu0 0.0
        %1048 = vmatpush2.msra.mxu0 0.0
        %1049 = vmatprep.subr.mxu0 0.0
        %1050 = vmatpush2.msra.mxu0 0.0
        %1051 = vmatprep.subr.mxu0 0.0
        %1052 = vmatpush2.msra.mxu0 0.0
        %1053 = vmatprep.subr.mxu0 0.0
        %1054 = vmatpush2.msra.mxu0 0.0
        %1055 = vmatprep.subr.mxu0 0.0
        %1056 = vmatpush2.msra.mxu0 0.0
        %1057 = vmatprep.subr.mxu0 0.0
        %1058 = vmatpush2.msra.mxu0 0.0
        %1059 = vmatprep.subr.mxu0 0.0
        %1060 = vmatpush2.msra.mxu0 0.0
        %1061 = vmatprep.subr.mxu0 0.0
        %1062 = vmatpush2.msra.mxu0 0.0
        %1063 = vmatprep.subr.mxu0 0.0
        %1064 = vmatpush2.msra.mxu0 0.0
        %1065 = vmatprep.subr.mxu0 0.0
        %1066 = vmatpush2.msra.mxu0 0.0
        %1067 = vmatprep.subr.mxu0 0.0
        %1068 = vmatpush2.msra.mxu0 0.0
        %1069 = vmatprep.subr.mxu0 0.0
        %1070 = vmatpush2.msra.mxu0 0.0
        %1071 = vmatprep.subr.mxu0 0.0
        %1072 = vmatpush2.msra.mxu0 0.0
        %1073 = vmatprep.subr.mxu0 0.0
        %1074 = vmatpush2.msra.mxu0 0.0
        %1075 = vmatprep.subr.mxu0 0.0
        %1076 = vmatpush2.msra.mxu0 0.0
        %1077 = vmatprep.subr.mxu0 0.0
        %1078 = vmatpush2.msra.mxu0 0.0
        %1079 = vmatprep.mubr.f32.mxu0 0.0
        %1080 = vmatmul.mubr.f32.gmra.mxu0 %v1013
        %v1081 = vpop.f32.mrf.mxu0
        %v1082 = vadd.f32 0.0, %v1081
        %v1083 = vpop.f32.mrf.mxu0
        %1084 = vdwg.mxu0
        %v1085 = vadd.f32 %v1012, %v1082
        %v1086 = vxor.u32 %v1085, 2147483648
        %v1087 = vmul.f32 %v1086, 1.442695
        %v1088 = vpow.pop %v1087
        %v1089 = vadd.f32 %v1088, 1.0
        %v1090 = vrcp.pop %v1089
        %v1091 = vmul.f32 1.0, %v1090
        %v1092 = vtanh.pop %v1085
        %v1093 = vmul.f32 %v1091, %v998
        %1095 = vrot.lane.b32.xlu0 %v1092, 64
        %v1096 = vpop.permute.xlu0 %1095
        %v1098 = vmul.f32 %v1091, %v1096
        %1100 = vrot.lane.b32.xlu0 %v1098, 32
        %v1101 = vpop.permute.xlu0 %1100
        %v1103 = vadd.f32 %v1093, %v1101
        %v1104 = vtanh.pop %v1103
        %1106 = vrot.lane.b32.xlu0 %v1104, 64
        %v1107 = vpop.permute.xlu0 %1106
        %v1109 = vmul.f32 %v1091, %v1107
        %1111 = vrot.lane.b32.xlu0 %v1109, 32
        %v1112 = vpop.permute.xlu0 %1111
        %s1114 = scalar_lea.vmem [#allocation2], 40
        %1115 = vst.msk [vmem:[%s1114] sm:$0xff] %vm345, %v1112
        %s1116 = scalar_lea.vmem [#allocation3], 48
        %v1117 = vld [vmem:[%s1116] sm:$0xff]
        %v1118 = vsel %vm345, %v1112, 0
        %1120 = vmatprep.subr.mxu0 0.0
        %1121 = vmatpush1.msra.mxu0 0.0
        %1122 = vmatprep.subr.mxu0 0.0
        %1123 = vmatpush1.msra.mxu0 0.0
        %1124 = vmatprep.subr.mxu0 0.0
        %1125 = vmatpush1.msra.mxu0 0.0
        %1126 = vmatprep.subr.mxu0 0.0
        %1127 = vmatpush1.msra.mxu0 0.0
        %1128 = vmatprep.subr.mxu0 0.0
        %1129 = vmatpush1.msra.mxu0 0.0
        %1130 = vmatprep.subr.mxu0 0.0
        %1131 = vmatpush1.msra.mxu0 0.0
        %1132 = vmatprep.subr.mxu0 0.0
        %1133 = vmatpush1.msra.mxu0 0.0
        %1134 = vmatprep.subr.mxu0 0.0
        %1135 = vmatpush1.msra.mxu0 0.0
        %1136 = vmatprep.subr.mxu0 0.0
        %1137 = vmatpush1.msra.mxu0 0.0
        %1138 = vmatprep.subr.mxu0 0.0
        %1139 = vmatpush1.msra.mxu0 0.0
        %1140 = vmatprep.subr.mxu0 0.0
        %1141 = vmatpush1.msra.mxu0 0.0
        %1142 = vmatprep.subr.mxu0 0.0
        %1143 = vmatpush1.msra.mxu0 0.0
        %1144 = vmatprep.subr.mxu0 0.0
        %1145 = vmatpush1.msra.mxu0 %v486
        %1146 = vmatprep.subr.mxu0 0.0
        %1147 = vmatpush1.msra.mxu0 %v485
        %1148 = vmatprep.subr.mxu0 0.0
        %1149 = vmatpush1.msra.mxu0 %v484
        %1150 = vmatprep.subr.mxu0 0.0
        %1151 = vmatpush1.msra.mxu0 %v483
        %1152 = vmatprep.subr.mxu0 0.0
        %1153 = vmatpush2.msra.mxu0 0.0
        %1154 = vmatprep.subr.mxu0 0.0
        %1155 = vmatpush2.msra.mxu0 0.0
        %1156 = vmatprep.subr.mxu0 0.0
        %1157 = vmatpush2.msra.mxu0 0.0
        %1158 = vmatprep.subr.mxu0 0.0
        %1159 = vmatpush2.msra.mxu0 0.0
        %1160 = vmatprep.subr.mxu0 0.0
        %1161 = vmatpush2.msra.mxu0 0.0
        %1162 = vmatprep.subr.mxu0 0.0
        %1163 = vmatpush2.msra.mxu0 0.0
        %1164 = vmatprep.subr.mxu0 0.0
        %1165 = vmatpush2.msra.mxu0 0.0
        %1166 = vmatprep.subr.mxu0 0.0
        %1167 = vmatpush2.msra.mxu0 0.0
        %1168 = vmatprep.subr.mxu0 0.0
        %1169 = vmatpush2.msra.mxu0 0.0
        %1170 = vmatprep.subr.mxu0 0.0
        %1171 = vmatpush2.msra.mxu0 0.0
        %1172 = vmatprep.subr.mxu0 0.0
        %1173 = vmatpush2.msra.mxu0 0.0
        %1174 = vmatprep.subr.mxu0 0.0
        %1175 = vmatpush2.msra.mxu0 0.0
        %1176 = vmatprep.subr.mxu0 0.0
        %1177 = vmatpush2.msra.mxu0 0.0
        %1178 = vmatprep.subr.mxu0 0.0
        %1179 = vmatpush2.msra.mxu0 0.0
        %1180 = vmatprep.subr.mxu0 0.0
        %1181 = vmatpush2.msra.mxu0 0.0
        %1182 = vmatprep.subr.mxu0 0.0
        %1183 = vmatpush2.msra.mxu0 0.0
        %1184 = vmatprep.mubr.f32.mxu0 0.0
        %1185 = vmatmul.mubr.f32.gmra.mxu0 %v1118
        %v1186 = vpop.f32.mrf.mxu0
        %v1187 = vadd.f32 0.0, %v1186
        %v1188 = vpop.f32.mrf.mxu0
        %1189 = vdwg.mxu0
        %v1190 = vadd.f32 %v1117, %v1187
        %v1191 = vxor.u32 %v1190, 2147483648
        %v1192 = vmul.f32 %v1191, 1.442695
        %v1193 = vpow.pop %v1192
        %v1194 = vadd.f32 %v1193, 1.0
        %v1195 = vrcp.pop %v1194
        %v1196 = vmul.f32 1.0, %v1195
        %v1197 = vtanh.pop %v1190
        %v1198 = vmul.f32 %v1196, %v1103
        %1200 = vrot.lane.b32.xlu0 %v1197, 64
        %v1201 = vpop.permute.xlu0 %1200
        %v1203 = vmul.f32 %v1196, %v1201
        %1205 = vrot.lane.b32.xlu0 %v1203, 32
        %v1206 = vpop.permute.xlu0 %1205
        %v1208 = vadd.f32 %v1198, %v1206
        %v1209 = vtanh.pop %v1208
        %1211 = vrot.lane.b32.xlu0 %v1209, 64
        %v1212 = vpop.permute.xlu0 %1211
        %v1214 = vmul.f32 %v1196, %v1212
        %1216 = vrot.lane.b32.xlu0 %v1214, 32
        %v1217 = vpop.permute.xlu0 %1216
        %s1219 = scalar_lea.vmem [#allocation2], 48
        %1220 = vst.msk [vmem:[%s1219] sm:$0xff] %vm345, %v1217
        %s1221 = scalar_lea.vmem [#allocation3], 56
        %v1222 = vld [vmem:[%s1221] sm:$0xff]
        %v1223 = vsel %vm345, %v1217, 0
        %1225 = vmatprep.subr.mxu0 0.0
        %1226 = vmatpush1.msra.mxu0 0.0
        %1227 = vmatprep.subr.mxu0 0.0
        %1228 = vmatpush1.msra.mxu0 0.0
        %1229 = vmatprep.subr.mxu0 0.0
        %1230 = vmatpush1.msra.mxu0 0.0
        %1231 = vmatprep.subr.mxu0 0.0
        %1232 = vmatpush1.msra.mxu0 0.0
        %1233 = vmatprep.subr.mxu0 0.0
        %1234 = vmatpush1.msra.mxu0 0.0
        %1235 = vmatprep.subr.mxu0 0.0
        %1236 = vmatpush1.msra.mxu0 0.0
        %1237 = vmatprep.subr.mxu0 0.0
        %1238 = vmatpush1.msra.mxu0 0.0
        %1239 = vmatprep.subr.mxu0 0.0
        %1240 = vmatpush1.msra.mxu0 0.0
        %1241 = vmatprep.subr.mxu0 0.0
        %1242 = vmatpush1.msra.mxu0 0.0
        %1243 = vmatprep.subr.mxu0 0.0
        %1244 = vmatpush1.msra.mxu0 0.0
        %1245 = vmatprep.subr.mxu0 0.0
        %1246 = vmatpush1.msra.mxu0 0.0
        %1247 = vmatprep.subr.mxu0 0.0
        %1248 = vmatpush1.msra.mxu0 0.0
        %1249 = vmatprep.subr.mxu0 0.0
        %1250 = vmatpush1.msra.mxu0 %v486
        %1251 = vmatprep.subr.mxu0 0.0
        %1252 = vmatpush1.msra.mxu0 %v485
        %1253 = vmatprep.subr.mxu0 0.0
        %1254 = vmatpush1.msra.mxu0 %v484
        %1255 = vmatprep.subr.mxu0 0.0
        %1256 = vmatpush1.msra.mxu0 %v483
        %1257 = vmatprep.subr.mxu0 0.0
        %1258 = vmatpush2.msra.mxu0 0.0
        %1259 = vmatprep.subr.mxu0 0.0
        %1260 = vmatpush2.msra.mxu0 0.0
        %1261 = vmatprep.subr.mxu0 0.0
        %1262 = vmatpush2.msra.mxu0 0.0
        %1263 = vmatprep.subr.mxu0 0.0
        %1264 = vmatpush2.msra.mxu0 0.0
        %1265 = vmatprep.subr.mxu0 0.0
        %1266 = vmatpush2.msra.mxu0 0.0
        %1267 = vmatprep.subr.mxu0 0.0
        %1268 = vmatpush2.msra.mxu0 0.0
        %1269 = vmatprep.subr.mxu0 0.0
        %1270 = vmatpush2.msra.mxu0 0.0
        %1271 = vmatprep.subr.mxu0 0.0
        %1272 = vmatpush2.msra.mxu0 0.0
        %1273 = vmatprep.subr.mxu0 0.0
        %1274 = vmatpush2.msra.mxu0 0.0
        %1275 = vmatprep.subr.mxu0 0.0
        %1276 = vmatpush2.msra.mxu0 0.0
        %1277 = vmatprep.subr.mxu0 0.0
        %1278 = vmatpush2.msra.mxu0 0.0
        %1279 = vmatprep.subr.mxu0 0.0
        %1280 = vmatpush2.msra.mxu0 0.0
        %1281 = vmatprep.subr.mxu0 0.0
        %1282 = vmatpush2.msra.mxu0 0.0
        %1283 = vmatprep.subr.mxu0 0.0
        %1284 = vmatpush2.msra.mxu0 0.0
        %1285 = vmatprep.subr.mxu0 0.0
        %1286 = vmatpush2.msra.mxu0 0.0
        %1287 = vmatprep.subr.mxu0 0.0
        %1288 = vmatpush2.msra.mxu0 0.0
        %1289 = vmatprep.mubr.f32.mxu0 0.0
        %1290 = vmatmul.mubr.f32.gmra.mxu0 %v1223
        %v1291 = vpop.f32.mrf.mxu0
        %v1292 = vadd.f32 0.0, %v1291
        %v1293 = vpop.f32.mrf.mxu0
        %1294 = vdwg.mxu0
        %v1295 = vadd.f32 %v1222, %v1292
        %v1296 = vxor.u32 %v1295, 2147483648
        %v1297 = vmul.f32 %v1296, 1.442695
        %v1298 = vpow.pop %v1297
        %v1299 = vadd.f32 %v1298, 1.0
        %v1300 = vrcp.pop %v1299
        %v1301 = vmul.f32 1.0, %v1300
        %v1302 = vtanh.pop %v1295
        %v1303 = vmul.f32 %v1301, %v1208
        %1305 = vrot.lane.b32.xlu0 %v1302, 64
        %v1306 = vpop.permute.xlu0 %1305
        %v1308 = vmul.f32 %v1301, %v1306
        %1310 = vrot.lane.b32.xlu0 %v1308, 32
        %v1311 = vpop.permute.xlu0 %1310
        %v1313 = vadd.f32 %v1303, %v1311
        %v1314 = vtanh.pop %v1313
        %1316 = vrot.lane.b32.xlu0 %v1314, 64
        %v1317 = vpop.permute.xlu0 %1316
        %v1319 = vmul.f32 %v1301, %v1317
        %1321 = vrot.lane.b32.xlu0 %v1319, 32
        %v1322 = vpop.permute.xlu0 %1321
        %s1324 = scalar_lea.vmem [#allocation2], 56
        %1325 = vst.msk [vmem:[%s1324] sm:$0xff] %vm345, %v1322
        %1326 = vst.msk [vmem:[%s246] sm:$0xff] %vm345, %v1322
        %1328 = vrot.lane.b32.xlu0 %v1313, 96
        %v1329 = vpop.permute.xlu0 %1328
        %1331 = vst.msk [vmem:[%s253] sm:$0xff] %vm345, %v1329
        %s1332 = sand.u32 %s112, 1
        %s1333 = scalar_lea.sflag [#allocation7], %s1332
        %s1334 = sand.u32 %s112, 1
        %s1335 = smul.addr %s1334, 8
        %s1336 = scalar_lea.vmem [#allocation8], %s1335
        %s1337 = sand.u32 %s138, 1
        %s1338 = scalar_lea.sflag [#allocation10], %s1337
        %s1339 = sand.u32 %s138, 1
        %s1340 = smul.addr %s1339, 8
        %s1341 = scalar_lea.vmem [#allocation9], %s1340
        // Predicated region
        $region75: #{tpu_custom_call.1} parent=31 // pred_check
          %p1342 = pneg %p122
        $region76: #{tpu_custom_call.1} parent=31 // pred_check_branch
          %1344 = sbr.rel (%p1342) target = $region78
        $region77: #{tpu_custom_call.1} parent=31 // pred_region
          %s1346 = ssub.s32 128, 128
          %1347 = vsyncadd %s1333, %s1346
          %s1348 = smul.addr %s26, 128
          %s1349 = scalar_lea.hbm %s4, %s1348
          %s1351 = sshll.u32 %s1336, 4
          %s1352 = int_to_ptr.vmem [resolvable:$true] %s1351
          %1354 = dma.vmem_to_hbm [thread:$0]  %s1352, 128, %s1349, %s1333
        $region78: #{tpu_custom_call.1} parent=31 // pred_fallthru
          _
        // Predicated region
        $region79: #{tpu_custom_call.1} parent=31 // pred_check
          %p1355 = pneg %p148
        $region80: #{tpu_custom_call.1} parent=31 // pred_check_branch
          %1357 = sbr.rel (%p1355) target = $region82
        $region81: #{tpu_custom_call.1} parent=31 // pred_region
          %s1359 = ssub.s32 128, 128
          %1360 = vsyncadd %s1338, %s1359
          %s1361 = smul.addr %s26, 128
          %s1362 = scalar_lea.hbm %s5, %s1361
          %s1364 = sshll.u32 %s1341, 4
          %s1365 = int_to_ptr.vmem [resolvable:$true] %s1364
          %1367 = dma.vmem_to_hbm [thread:$0]  %s1365, 128, %s1362, %s1338
        $region82: #{tpu_custom_call.1} parent=31 // pred_fallthru
          _
      $region32: #{tpu_custom_call.1} parent=5 // pred_fallthru
        _
      %p1368 = scmp.le.s32.totalorder 2, %s21
      // Predicated region
      $region83: #{tpu_custom_call.1} parent=5 // pred_check
        %p1369 = pneg %p1368
      $region84: #{tpu_custom_call.1} parent=5 // pred_check_branch
        %1371 = sbr.rel (%p1369) target = $region86
      $region85: #{tpu_custom_call.1} parent=5 // pred_region
        %s1372 = ssub.s32 %s21, 2
        // Predicated region
        $region87: #{tpu_custom_call.1} parent=85 // pred_check
          %p1373 = pneg %p128
        $region88: #{tpu_custom_call.1} parent=85 // pred_check_branch
          %1375 = sbr.rel (%p1373) target = $region90
        $region89: #{tpu_custom_call.1} parent=85 // pred_region
          %s1376 = sand.u32 %s113, 1
          %s1377 = scalar_lea.sflag [#allocation7], %s1376
          %s1378 = sand.u32 %s113, 1
          %s1379 = smul.addr %s1378, 8
          %s1380 = scalar_lea.vmem [#allocation8], %s1379
          %1381 = dma.done %s1377, 128
        $region90: #{tpu_custom_call.1} parent=85 // pred_fallthru
          _
        // Predicated region
        $region91: #{tpu_custom_call.1} parent=85 // pred_check
          %p1382 = pneg %p154
        $region92: #{tpu_custom_call.1} parent=85 // pred_check_branch
          %1384 = sbr.rel (%p1382) target = $region94
        $region93: #{tpu_custom_call.1} parent=85 // pred_region
          %s1385 = sand.u32 %s139, 1
          %s1386 = scalar_lea.sflag [#allocation10], %s1385
          %s1387 = sand.u32 %s139, 1
          %s1388 = smul.addr %s1387, 8
          %s1389 = scalar_lea.vmem [#allocation9], %s1388
          %1390 = dma.done %s1386, 128
        $region94: #{tpu_custom_call.1} parent=85 // pred_fallthru
          _
      $region86: #{tpu_custom_call.1} parent=5 // pred_fallthru
        _
    $region6: #{tpu_custom_call.1} parent=1 // loop_footer
      %s25 = sadd.s32 1, %s21
    $region7: #{tpu_custom_call.1} parent=1 // loop_footer_branch
      %20 = sbr.rel target = $region3
    $region8: #{tpu_custom_call.1} parent=1 // loop_exit
      _
    %1391 = vsyncpa [#allocation6], 1
    %s1392 = scalar_lea.sflag [#allocation6], 1
    %1393 = vsyncpa %s1392, 1
    %1394 = vsyncpa [#allocation7], 1
    %s1395 = scalar_lea.sflag [#allocation7], 1
    %1396 = vsyncpa %s1395, 1
    %1397 = vsyncpa [#allocation10], 1
    %s1398 = scalar_lea.sflag [#allocation10], 1
    %1399 = vsyncpa %s1398, 1
  %1400 = vsyncmov [#allocation4]
  %s1401 = vpop.sfrf %1400
  %p1402 = scmp.eq.s32.totalorder %s1401, 0
  %p1403 = pneg %p1402
  %1405 = shalt.err (%p1403)

</llo_original>
